<compile_context>
chip_gen: v6e
topology: v6e:2x2x1
jax: 0.10.0
libtpu: 0.0.40
codegen_flags: <defaults>
</compile_context>

<pallas_src>
import functools

import jax
import jax.numpy as jnp
from jax import lax
from jax.experimental import pallas as pl
from jax.experimental.pallas import tpu as pltpu


# ----------------------------------------------------------------------------
# Fused Pallas kernel: whole forward pass for one sample per grid step
# ----------------------------------------------------------------------------
def _fused_forward_kernel(x_ref, *refs, n_conv, n_linear):
    o_ref = refs[-1]
    params = refs[:-1]
    idx = 0

    a = x_ref[0]  # (H, W*Cin) f32, layout (h, w, c) flattened over (w, c)

    # ---- conv stages: conv + bias + ReLU + 2x2 maxpool, all fused ---------
    for _ in range(n_conv):
        band_ref, bias_ref, se_h, so_h, cw_e, cw_o = params[idx:idx + 6]
        idx += 6
        kh = band_ref.shape[0]
        ho = se_h.shape[1]
        acc = jnp.zeros((ho, band_ref.shape[2]), jnp.float32)
        for i in range(kh):  # small static kernel height -> unrolled
            acc = acc + jnp.dot(a[i:i + ho, :], band_ref[i],
                                preferred_element_type=jnp.float32)
        acc = jnp.maximum(acc + bias_ref[...], 0.0)          # bias + ReLU
        # 2x2 max pool (floor mode): max over even/odd rows, then even/odd
        # column groups, via exact 0/1 selection matmuls + elementwise max.
        hmax = jnp.maximum(
            jnp.dot(se_h[...], acc, preferred_element_type=jnp.float32),
            jnp.dot(so_h[...], acc, preferred_element_type=jnp.float32))
        a = jnp.maximum(
            jnp.dot(hmax, cw_e[...], preferred_element_type=jnp.float32),
            jnp.dot(hmax, cw_o[...], preferred_element_type=jnp.float32))
        # a: (Hp, Wp*Cout), layout (h, w, c)

    # ---- flatten + first linear (+ ReLU), no transpose/reshape ------------
    w1_ref, b1_ref = params[idx], params[idx + 1]
    idx += 2
    rows, row_width = a.shape
    z = jnp.zeros((1, w1_ref.shape[1]), jnp.float32)
    for r in range(rows):
        z = z + jnp.dot(a[r:r + 1, :],
                        w1_ref[r * row_width:(r + 1) * row_width, :],
                        preferred_element_type=jnp.float32)
    z = jnp.maximum(z + b1_ref[...], 0.0)

    # ---- remaining linear layers (ReLU on all but the last) ---------------
    n_rest = n_linear - 1
    for li in range(n_rest):
        w_ref, b_ref = params[idx], params[idx + 1]
        idx += 2
        z = jnp.dot(z, w_ref[...], preferred_element_type=jnp.float32) + b_ref[...]
        if li < n_rest - 1:
            z = jnp.maximum(z, 0.0)

    o_ref[0] = z


# ----------------------------------------------------------------------------
# Trace-time weight preprocessing (no runtime activation shuffles)
# ----------------------------------------------------------------------------
def _row_selector(rows_out, rows_in, offset):
    """(rows_out, rows_in) matrix S with S[r, 2r + offset] = 1."""
    idx = jnp.arange(rows_out)
    return jnp.zeros((rows_out, rows_in), jnp.float32).at[
        idx, 2 * idx + offset].set(1.0)


def _band_weights(w, win):
    """PyTorch conv weight (Cout,Cin,KH,KW) -> banded (KH, Win*Cin, Wo*Cout).

    band[i, p*Cin + c, w'*Cout + o] = w[o, c, i, p - w']   (0 outside [0, KW))
    so that conv_out[r, w'*Cout + o] = sum_i x2d[r+i, :] @ band[i],
    with x2d[r, p*Cin + c] = x_nhwc[r, p, c].
    """
    cout, cin, kh, kw = w.shape
    wo = win - kw + 1
    shifts = jnp.stack(
        [jnp.eye(win, wo, k=-j, dtype=jnp.float32) for j in range(kw)])  # (kw,win,wo)
    wt = jnp.transpose(w.astype(jnp.float32), (2, 3, 1, 0))              # (kh,kw,cin,cout)
    band = jnp.einsum("jpw,ijco->ipcwo", shifts, wt)                     # (kh,win,cin,wo,cout)
    return band.reshape(kh, win * cin, wo * cout)


def _const_index_map(ndim):
    return lambda b: (0,) * ndim


# ----------------------------------------------------------------------------
# Public forward: one fused pallas_call
# ----------------------------------------------------------------------------
def cnn_regressor_forward(x_nchw, conv_params, lin_params):
    """conv_params: list of (w:(Cout,Cin,KH,KW), b:(Cout,)) — PyTorch layout.
    lin_params:  list of (w:(Out,In), b:(Out,))            — PyTorch layout.
    """
    n, cin, hin, win = x_nchw.shape
    # One cheap input relayout: NCHW -> (N, H, W*C).  (All other layout work
    # is folded into trace-time weight transformations below.)
    x2 = jnp.transpose(x_nchw.astype(jnp.float32), (0, 2, 3, 1)).reshape(
        n, hin, win * cin)

    params = []
    flops = 0
    c_dim, h_dim, w_dim = cin, hin, win
    n_conv = len(conv_params)
    for wgt, bias in conv_params:
        cout, cin_l, kh, kw = wgt.shape
        assert cin_l == c_dim and kh == kw
        ho, wo = h_dim - kh + 1, w_dim - kw + 1
        hp, wp = ho // 2, wo // 2
        band = _band_weights(wgt, w_dim)                        # (kh, W*Cin, Wo*Cout)
        bias_t = jnp.tile(bias.astype(jnp.float32).reshape(1, 1, cout),
                          (1, wo, 1)).reshape(1, wo * cout)
        se_h = _row_selector(hp, ho, 0)                         # even rows
        so_h = _row_selector(hp, ho, 1)                         # odd rows
        eye_c = jnp.eye(cout, dtype=jnp.float32)
        cw_e = jnp.kron(_row_selector(wp, wo, 0).T, eye_c)      # even cols (Wo*C, Wp*C)
        cw_o = jnp.kron(_row_selector(wp, wo, 1).T, eye_c)      # odd cols
        params += [band, bias_t, se_h, so_h, cw_e, cw_o]
        flops += 2 * kh * ho * (w_dim * c_dim) * (wo * cout)
        flops += 4 * hp * ho * (wo * cout) + 4 * hp * (wo * cout) * (wp * cout)
        c_dim, h_dim, w_dim = cout, hp, wp

    # First linear: fold torch's NCHW flatten (C,H,W) order into a
    # trace-time permutation of the weight columns; kernel feeds the NHWC
    # flatten directly.
    w1, b1 = lin_params[0]
    h1 = w1.shape[0]
    w1p = jnp.transpose(w1.astype(jnp.float32).reshape(h1, c_dim, h_dim, w_dim),
                        (2, 3, 1, 0)).reshape(h_dim * w_dim * c_dim, h1)
    params += [w1p, b1.astype(jnp.float32).reshape(1, h1)]
    flops += 2 * h_dim * w_dim * c_dim * h1
    for wl, bl in lin_params[1:]:
        params += [jnp.transpose(wl.astype(jnp.float32)),
                   bl.astype(jnp.float32).reshape(1, -1)]
        flops += 2 * wl.shape[0] * wl.shape[1]
    y_dim = lin_params[-1][0].shape[0]

    in_specs = [pl.BlockSpec((1, hin, win * cin), lambda b: (b, 0, 0))]
    in_specs += [pl.BlockSpec(p.shape, _const_index_map(p.ndim)) for p in params]
    bytes_accessed = int(x2.size + sum(int(p.size) for p in params) + n * y_dim) * 4

    out = pl.pallas_call(
        functools.partial(_fused_forward_kernel,
                          n_conv=n_conv, n_linear=len(lin_params)),
        out_shape=jax.ShapeDtypeStruct((n, 1, y_dim), jnp.float32),
        grid_spec=pltpu.PrefetchScalarGridSpec(
            num_scalar_prefetch=0,
            grid=(n,),
            in_specs=in_specs,
            out_specs=pl.BlockSpec((1, 1, y_dim), lambda b: (b, 0, 0)),
        ),
        compiler_params=pltpu.CompilerParams(
            dimension_semantics=("parallel",)),
        cost_estimate=pl.CostEstimate(flops=n * flops, transcendentals=0,
                                      bytes_accessed=bytes_accessed),
    )(x2, *params)
    return out.reshape(n, y_dim)


# ----------------------------------------------------------------------------
# Pure-JAX reference (for verification)
# ----------------------------------------------------------------------------
def reference_forward(x_nchw, conv_params, lin_params):
    x = x_nchw.astype(jnp.float32)
    for w, b in conv_params:
        x = lax.conv_general_dilated(
            x, w, window_strides=(1, 1), padding="VALID",
            dimension_numbers=("NCHW", "OIHW", "NCHW"),
            precision=lax.Precision.HIGHEST,
        )
        x = jnp.maximum(x + b.reshape(1, -1, 1, 1), 0.0)
        x = lax.reduce_window(
            x, -jnp.inf, lax.max, (1, 1, 2, 2), (1, 1, 2, 2), "VALID")
    x = x.reshape(x.shape[0], -1)
    for w, b in lin_params[:-1]:
        x = jnp.maximum(x @ w.T + b, 0.0)
    w, b = lin_params[-1]
    return x @ w.T + b


# ----------------------------------------------------------------------------
# Deterministic parameter construction (PyTorch-style fan-in uniform init)
# ----------------------------------------------------------------------------
def init_params(key, in_channels, h, w, conv_channel_nums, conv_kernel_sizes,
                linear_hid_sizes, y_dim):
    conv_params, lin_params = [], []
    c_dim, h_dim, w_dim = in_channels, h, w
    for cout, ks in zip(conv_channel_nums, conv_kernel_sizes):
        key, kw_, kb_ = jax.random.split(key, 3)
        bound = 1.0 / jnp.sqrt(c_dim * ks * ks)
        wgt = jax.random.uniform(kw_, (cout, c_dim, ks, ks), jnp.float32,
                                 -bound, bound)
        bias = jax.random.uniform(kb_, (cout,), jnp.float32, -bound, bound)
        conv_params.append((wgt, bias))
        c_dim = cout
        h_dim = (h_dim - ks + 1) // 2
        w_dim = (w_dim - ks + 1) // 2
    flattened = c_dim * h_dim * w_dim
    sizes = [flattened] + list(linear_hid_sizes) + [y_dim]
    for i in range(len(sizes) - 1):
        key, kw_, kb_ = jax.random.split(key, 3)
        fan_in, fan_out = sizes[i], sizes[i + 1]
        bound = 1.0 / jnp.sqrt(fan_in)
        wgt = jax.random.uniform(kw_, (fan_out, fan_in), jnp.float32,
                                 -bound, bound)
        bias = jax.random.uniform(kb_, (fan_out,), jnp.float32, -bound, bound)
        lin_params.append((wgt, bias))
    return conv_params, lin_params


if __name__ == "__main__":
    # TODO(synk): fit()/optimizer/normalization logic is training-side, not
    # part of forward(); only the forward pass is implemented as a kernel.
    N, C, H, W = 2, 4, 16, 16
    conv_channel_nums = [8, 16]
    conv_kernel_sizes = [3, 3]
    linear_hid_sizes = [32, 32]
    y_dim = 3

    root = jax.random.PRNGKey(0)
    k_in, k_par = jax.random.split(root)
    x = jax.random.normal(k_in, (N, C, H, W), jnp.float32)

    conv_params, lin_params = init_params(
        k_par, C, H, W, conv_channel_nums, conv_kernel_sizes,
        linear_hid_sizes, y_dim)

    out = cnn_regressor_forward(x, conv_params, lin_params)
    out = jax.block_until_ready(out)

    ref = reference_forward(x, conv_params, lin_params)
    assert out.shape == (N, y_dim), out.shape
    assert jnp.allclose(out, ref, atol=1e-2, rtol=1e-2), (
        float(jnp.max(jnp.abs(out - ref))))

    print("KERNEL_OK")
</pallas_src>

<mosaic_0001>
module attributes {stable_mosaic.version = 11 : i64} {
  func.func @_fused_forward_kernel(%arg0: i32, %arg1: memref<1x16x64xf32, #tpu.memory_space<vmem>>, %arg2: memref<3x64x112xf32, #tpu.memory_space<vmem>>, %arg3: memref<1x112xf32, #tpu.memory_space<vmem>>, %arg4: memref<7x14xf32, #tpu.memory_space<vmem>>, %arg5: memref<7x14xf32, #tpu.memory_space<vmem>>, %arg6: memref<112x56xf32, #tpu.memory_space<vmem>>, %arg7: memref<112x56xf32, #tpu.memory_space<vmem>>, %arg8: memref<3x56x80xf32, #tpu.memory_space<vmem>>, %arg9: memref<1x80xf32, #tpu.memory_space<vmem>>, %arg10: memref<2x5xf32, #tpu.memory_space<vmem>>, %arg11: memref<2x5xf32, #tpu.memory_space<vmem>>, %arg12: memref<80x32xf32, #tpu.memory_space<vmem>>, %arg13: memref<80x32xf32, #tpu.memory_space<vmem>>, %arg14: memref<64x32xf32, #tpu.memory_space<vmem>>, %arg15: memref<1x32xf32, #tpu.memory_space<vmem>>, %arg16: memref<32x32xf32, #tpu.memory_space<vmem>>, %arg17: memref<1x32xf32, #tpu.memory_space<vmem>>, %arg18: memref<32x3xf32, #tpu.memory_space<vmem>>, %arg19: memref<1x3xf32, #tpu.memory_space<vmem>>, %arg20: memref<1x1x3xf32, #tpu.memory_space<vmem>>) attributes {dimension_semantics = [#tpu.dimension_semantics<parallel>], iteration_bounds = array<i64: 2>, scalar_prefetch = 0 : i64, scratch_operands = 0 : i64, tpu.core_type = #tpu.core_type<tc>, window_params = [{transform_indices = @transform_0, window_bounds = array<i64: 1, 16, 64>}, {pipeline_mode = #tpu.pipeline_mode<synchronous>, transform_indices = @transform_1, window_bounds = array<i64: 3, 64, 112>}, {pipeline_mode = #tpu.pipeline_mode<synchronous>, transform_indices = @transform_2, window_bounds = array<i64: 1, 112>}, {pipeline_mode = #tpu.pipeline_mode<synchronous>, transform_indices = @transform_3, window_bounds = array<i64: 7, 14>}, {pipeline_mode = #tpu.pipeline_mode<synchronous>, transform_indices = @transform_4, window_bounds = array<i64: 7, 14>}, {pipeline_mode = #tpu.pipeline_mode<synchronous>, transform_indices = @transform_5, window_bounds = array<i64: 112, 56>}, {pipeline_mode = #tpu.pipeline_mode<synchronous>, transform_indices = @transform_6, window_bounds = array<i64: 112, 56>}, {pipeline_mode = #tpu.pipeline_mode<synchronous>, transform_indices = @transform_7, window_bounds = array<i64: 3, 56, 80>}, {pipeline_mode = #tpu.pipeline_mode<synchronous>, transform_indices = @transform_8, window_bounds = array<i64: 1, 80>}, {pipeline_mode = #tpu.pipeline_mode<synchronous>, transform_indices = @transform_9, window_bounds = array<i64: 2, 5>}, {pipeline_mode = #tpu.pipeline_mode<synchronous>, transform_indices = @transform_10, window_bounds = array<i64: 2, 5>}, {pipeline_mode = #tpu.pipeline_mode<synchronous>, transform_indices = @transform_11, window_bounds = array<i64: 80, 32>}, {pipeline_mode = #tpu.pipeline_mode<synchronous>, transform_indices = @transform_12, window_bounds = array<i64: 80, 32>}, {pipeline_mode = #tpu.pipeline_mode<synchronous>, transform_indices = @transform_13, window_bounds = array<i64: 64, 32>}, {pipeline_mode = #tpu.pipeline_mode<synchronous>, transform_indices = @transform_14, window_bounds = array<i64: 1, 32>}, {pipeline_mode = #tpu.pipeline_mode<synchronous>, transform_indices = @transform_15, window_bounds = array<i64: 32, 32>}, {pipeline_mode = #tpu.pipeline_mode<synchronous>, transform_indices = @transform_16, window_bounds = array<i64: 1, 32>}, {pipeline_mode = #tpu.pipeline_mode<synchronous>, transform_indices = @transform_17, window_bounds = array<i64: 32, 3>}, {pipeline_mode = #tpu.pipeline_mode<synchronous>, transform_indices = @transform_18, window_bounds = array<i64: 1, 3>}, {transform_indices = @transform_19, window_bounds = array<i64: 1, 1, 3>}]} {
    %c0 = arith.constant 0 : index
    %c0_0 = arith.constant 0 : index
    %c0_1 = arith.constant 0 : index
    %0 = vector.load %arg1[%c0, %c0_0, %c0_1] : memref<1x16x64xf32, #tpu.memory_space<vmem>>, vector<1x16x64xf32>
    %1 = vector.shape_cast %0 : vector<1x16x64xf32> to vector<16x64xf32>
    %cst = arith.constant 0.000000e+00 : f32
    %2 = vector.broadcast %cst : f32 to vector<14x112xf32>
    %3 = vector.extract_strided_slice %1 {offsets = [0, 0], sizes = [14, 64], strides = [1, 1]} : vector<16x64xf32> to vector<14x64xf32>
    %c0_2 = arith.constant 0 : index
    %c0_3 = arith.constant 0 : index
    %c0_4 = arith.constant 0 : index
    %4 = vector.load %arg2[%c0_2, %c0_3, %c0_4] : memref<3x64x112xf32, #tpu.memory_space<vmem>>, vector<1x64x112xf32>
    %5 = vector.shape_cast %4 : vector<1x64x112xf32> to vector<64x112xf32>
    %cst_5 = arith.constant dense<0.000000e+00> : vector<14x112xf32>
    %6 = tpu.matmul %3, %5, %cst_5 {dimension_numbers = #tpu.dot_dimension_numbers<[1], [0], [0], [1], [0, 0, 1, 1], [], []>} : vector<14x64xf32>, vector<64x112xf32>, vector<14x112xf32> -> vector<14x112xf32>
    %7 = arith.addf %2, %6 : vector<14x112xf32>
    %8 = vector.extract_strided_slice %1 {offsets = [1, 0], sizes = [14, 64], strides = [1, 1]} : vector<16x64xf32> to vector<14x64xf32>
    %c1 = arith.constant 1 : index
    %c0_6 = arith.constant 0 : index
    %c0_7 = arith.constant 0 : index
    %9 = vector.load %arg2[%c1, %c0_6, %c0_7] : memref<3x64x112xf32, #tpu.memory_space<vmem>>, vector<1x64x112xf32>
    %10 = vector.shape_cast %9 : vector<1x64x112xf32> to vector<64x112xf32>
    %cst_8 = arith.constant dense<0.000000e+00> : vector<14x112xf32>
    %11 = tpu.matmul %8, %10, %cst_8 {dimension_numbers = #tpu.dot_dimension_numbers<[1], [0], [0], [1], [0, 0, 1, 1], [], []>} : vector<14x64xf32>, vector<64x112xf32>, vector<14x112xf32> -> vector<14x112xf32>
    %12 = arith.addf %7, %11 : vector<14x112xf32>
    %13 = vector.extract_strided_slice %1 {offsets = [2, 0], sizes = [14, 64], strides = [1, 1]} : vector<16x64xf32> to vector<14x64xf32>
    %c2 = arith.constant 2 : index
    %c0_9 = arith.constant 0 : index
    %c0_10 = arith.constant 0 : index
    %14 = vector.load %arg2[%c2, %c0_9, %c0_10] : memref<3x64x112xf32, #tpu.memory_space<vmem>>, vector<1x64x112xf32>
    %15 = vector.shape_cast %14 : vector<1x64x112xf32> to vector<64x112xf32>
    %cst_11 = arith.constant dense<0.000000e+00> : vector<14x112xf32>
    %16 = tpu.matmul %13, %15, %cst_11 {dimension_numbers = #tpu.dot_dimension_numbers<[1], [0], [0], [1], [0, 0, 1, 1], [], []>} : vector<14x64xf32>, vector<64x112xf32>, vector<14x112xf32> -> vector<14x112xf32>
    %17 = arith.addf %12, %16 : vector<14x112xf32>
    %c0_12 = arith.constant 0 : index
    %c0_13 = arith.constant 0 : index
    %18 = vector.load %arg3[%c0_12, %c0_13] : memref<1x112xf32, #tpu.memory_space<vmem>>, vector<1x112xf32>
    %19 = vector.broadcast %18 : vector<1x112xf32> to vector<14x112xf32>
    %20 = arith.addf %17, %19 : vector<14x112xf32>
    %cst_14 = arith.constant 0.000000e+00 : f32
    %21 = vector.broadcast %cst_14 : f32 to vector<14x112xf32>
    %22 = arith.maximumf %20, %21 : vector<14x112xf32>
    %c0_15 = arith.constant 0 : index
    %c0_16 = arith.constant 0 : index
    %23 = vector.load %arg4[%c0_15, %c0_16] : memref<7x14xf32, #tpu.memory_space<vmem>>, vector<7x14xf32>
    %cst_17 = arith.constant dense<0.000000e+00> : vector<7x112xf32>
    %24 = tpu.matmul %23, %22, %cst_17 {dimension_numbers = #tpu.dot_dimension_numbers<[1], [0], [0], [1], [0, 0, 1, 1], [], []>} : vector<7x14xf32>, vector<14x112xf32>, vector<7x112xf32> -> vector<7x112xf32>
    %c0_18 = arith.constant 0 : index
    %c0_19 = arith.constant 0 : index
    %25 = vector.load %arg5[%c0_18, %c0_19] : memref<7x14xf32, #tpu.memory_space<vmem>>, vector<7x14xf32>
    %cst_20 = arith.constant dense<0.000000e+00> : vector<7x112xf32>
    %26 = tpu.matmul %25, %22, %cst_20 {dimension_numbers = #tpu.dot_dimension_numbers<[1], [0], [0], [1], [0, 0, 1, 1], [], []>} : vector<7x14xf32>, vector<14x112xf32>, vector<7x112xf32> -> vector<7x112xf32>
    %27 = arith.maximumf %24, %26 : vector<7x112xf32>
    %c0_21 = arith.constant 0 : index
    %c0_22 = arith.constant 0 : index
    %28 = vector.load %arg6[%c0_21, %c0_22] : memref<112x56xf32, #tpu.memory_space<vmem>>, vector<112x56xf32>
    %cst_23 = arith.constant dense<0.000000e+00> : vector<7x56xf32>
    %29 = tpu.matmul %27, %28, %cst_23 {dimension_numbers = #tpu.dot_dimension_numbers<[1], [0], [0], [1], [0, 0, 1, 1], [], []>} : vector<7x112xf32>, vector<112x56xf32>, vector<7x56xf32> -> vector<7x56xf32>
    %c0_24 = arith.constant 0 : index
    %c0_25 = arith.constant 0 : index
    %30 = vector.load %arg7[%c0_24, %c0_25] : memref<112x56xf32, #tpu.memory_space<vmem>>, vector<112x56xf32>
    %cst_26 = arith.constant dense<0.000000e+00> : vector<7x56xf32>
    %31 = tpu.matmul %27, %30, %cst_26 {dimension_numbers = #tpu.dot_dimension_numbers<[1], [0], [0], [1], [0, 0, 1, 1], [], []>} : vector<7x112xf32>, vector<112x56xf32>, vector<7x56xf32> -> vector<7x56xf32>
    %32 = arith.maximumf %29, %31 : vector<7x56xf32>
    %cst_27 = arith.constant 0.000000e+00 : f32
    %33 = vector.broadcast %cst_27 : f32 to vector<5x80xf32>
    %34 = vector.extract_strided_slice %32 {offsets = [0, 0], sizes = [5, 56], strides = [1, 1]} : vector<7x56xf32> to vector<5x56xf32>
    %c0_28 = arith.constant 0 : index
    %c0_29 = arith.constant 0 : index
    %c0_30 = arith.constant 0 : index
    %35 = vector.load %arg8[%c0_28, %c0_29, %c0_30] : memref<3x56x80xf32, #tpu.memory_space<vmem>>, vector<1x56x80xf32>
    %36 = vector.shape_cast %35 : vector<1x56x80xf32> to vector<56x80xf32>
    %cst_31 = arith.constant dense<0.000000e+00> : vector<5x80xf32>
    %37 = tpu.matmul %34, %36, %cst_31 {dimension_numbers = #tpu.dot_dimension_numbers<[1], [0], [0], [1], [0, 0, 1, 1], [], []>} : vector<5x56xf32>, vector<56x80xf32>, vector<5x80xf32> -> vector<5x80xf32>
    %38 = arith.addf %33, %37 : vector<5x80xf32>
    %39 = vector.extract_strided_slice %32 {offsets = [1, 0], sizes = [5, 56], strides = [1, 1]} : vector<7x56xf32> to vector<5x56xf32>
    %c1_32 = arith.constant 1 : index
    %c0_33 = arith.constant 0 : index
    %c0_34 = arith.constant 0 : index
    %40 = vector.load %arg8[%c1_32, %c0_33, %c0_34] : memref<3x56x80xf32, #tpu.memory_space<vmem>>, vector<1x56x80xf32>
    %41 = vector.shape_cast %40 : vector<1x56x80xf32> to vector<56x80xf32>
    %cst_35 = arith.constant dense<0.000000e+00> : vector<5x80xf32>
    %42 = tpu.matmul %39, %41, %cst_35 {dimension_numbers = #tpu.dot_dimension_numbers<[1], [0], [0], [1], [0, 0, 1, 1], [], []>} : vector<5x56xf32>, vector<56x80xf32>, vector<5x80xf32> -> vector<5x80xf32>
    %43 = arith.addf %38, %42 : vector<5x80xf32>
    %44 = vector.extract_strided_slice %32 {offsets = [2, 0], sizes = [5, 56], strides = [1, 1]} : vector<7x56xf32> to vector<5x56xf32>
    %c2_36 = arith.constant 2 : index
    %c0_37 = arith.constant 0 : index
    %c0_38 = arith.constant 0 : index
    %45 = vector.load %arg8[%c2_36, %c0_37, %c0_38] : memref<3x56x80xf32, #tpu.memory_space<vmem>>, vector<1x56x80xf32>
    %46 = vector.shape_cast %45 : vector<1x56x80xf32> to vector<56x80xf32>
    %cst_39 = arith.constant dense<0.000000e+00> : vector<5x80xf32>
    %47 = tpu.matmul %44, %46, %cst_39 {dimension_numbers = #tpu.dot_dimension_numbers<[1], [0], [0], [1], [0, 0, 1, 1], [], []>} : vector<5x56xf32>, vector<56x80xf32>, vector<5x80xf32> -> vector<5x80xf32>
    %48 = arith.addf %43, %47 : vector<5x80xf32>
    %c0_40 = arith.constant 0 : index
    %c0_41 = arith.constant 0 : index
    %49 = vector.load %arg9[%c0_40, %c0_41] : memref<1x80xf32, #tpu.memory_space<vmem>>, vector<1x80xf32>
    %50 = vector.broadcast %49 : vector<1x80xf32> to vector<5x80xf32>
    %51 = arith.addf %48, %50 : vector<5x80xf32>
    %cst_42 = arith.constant 0.000000e+00 : f32
    %52 = vector.broadcast %cst_42 : f32 to vector<5x80xf32>
    %53 = arith.maximumf %51, %52 : vector<5x80xf32>
    %c0_43 = arith.constant 0 : index
    %c0_44 = arith.constant 0 : index
    %54 = vector.load %arg10[%c0_43, %c0_44] : memref<2x5xf32, #tpu.memory_space<vmem>>, vector<2x5xf32>
    %cst_45 = arith.constant dense<0.000000e+00> : vector<2x80xf32>
    %55 = tpu.matmul %54, %53, %cst_45 {dimension_numbers = #tpu.dot_dimension_numbers<[1], [0], [0], [1], [0, 0, 1, 1], [], []>} : vector<2x5xf32>, vector<5x80xf32>, vector<2x80xf32> -> vector<2x80xf32>
    %c0_46 = arith.constant 0 : index
    %c0_47 = arith.constant 0 : index
    %56 = vector.load %arg11[%c0_46, %c0_47] : memref<2x5xf32, #tpu.memory_space<vmem>>, vector<2x5xf32>
    %cst_48 = arith.constant dense<0.000000e+00> : vector<2x80xf32>
    %57 = tpu.matmul %56, %53, %cst_48 {dimension_numbers = #tpu.dot_dimension_numbers<[1], [0], [0], [1], [0, 0, 1, 1], [], []>} : vector<2x5xf32>, vector<5x80xf32>, vector<2x80xf32> -> vector<2x80xf32>
    %58 = arith.maximumf %55, %57 : vector<2x80xf32>
    %c0_49 = arith.constant 0 : index
    %c0_50 = arith.constant 0 : index
    %59 = vector.load %arg12[%c0_49, %c0_50] : memref<80x32xf32, #tpu.memory_space<vmem>>, vector<80x32xf32>
    %cst_51 = arith.constant dense<0.000000e+00> : vector<2x32xf32>
    %60 = tpu.matmul %58, %59, %cst_51 {dimension_numbers = #tpu.dot_dimension_numbers<[1], [0], [0], [1], [0, 0, 1, 1], [], []>} : vector<2x80xf32>, vector<80x32xf32>, vector<2x32xf32> -> vector<2x32xf32>
    %c0_52 = arith.constant 0 : index
    %c0_53 = arith.constant 0 : index
    %61 = vector.load %arg13[%c0_52, %c0_53] : memref<80x32xf32, #tpu.memory_space<vmem>>, vector<80x32xf32>
    %cst_54 = arith.constant dense<0.000000e+00> : vector<2x32xf32>
    %62 = tpu.matmul %58, %61, %cst_54 {dimension_numbers = #tpu.dot_dimension_numbers<[1], [0], [0], [1], [0, 0, 1, 1], [], []>} : vector<2x80xf32>, vector<80x32xf32>, vector<2x32xf32> -> vector<2x32xf32>
    %63 = arith.maximumf %60, %62 : vector<2x32xf32>
    %cst_55 = arith.constant 0.000000e+00 : f32
    %64 = vector.broadcast %cst_55 : f32 to vector<1x32xf32>
    %65 = vector.extract_strided_slice %63 {offsets = [0, 0], sizes = [1, 32], strides = [1, 1]} : vector<2x32xf32> to vector<1x32xf32>
    %c0_56 = arith.constant 0 : index
    %c0_57 = arith.constant 0 : index
    %66 = vector.load %arg14[%c0_56, %c0_57] : memref<64x32xf32, #tpu.memory_space<vmem>>, vector<32x32xf32>
    %cst_58 = arith.constant dense<0.000000e+00> : vector<1x32xf32>
    %67 = tpu.matmul %65, %66, %cst_58 {dimension_numbers = #tpu.dot_dimension_numbers<[1], [0], [0], [1], [0, 0, 1, 1], [], []>} : vector<1x32xf32>, vector<32x32xf32>, vector<1x32xf32> -> vector<1x32xf32>
    %68 = arith.addf %64, %67 : vector<1x32xf32>
    %69 = vector.extract_strided_slice %63 {offsets = [1, 0], sizes = [1, 32], strides = [1, 1]} : vector<2x32xf32> to vector<1x32xf32>
    %c32 = arith.constant 32 : index
    %c0_59 = arith.constant 0 : index
    %70 = vector.load %arg14[%c32, %c0_59] : memref<64x32xf32, #tpu.memory_space<vmem>>, vector<32x32xf32>
    %cst_60 = arith.constant dense<0.000000e+00> : vector<1x32xf32>
    %71 = tpu.matmul %69, %70, %cst_60 {dimension_numbers = #tpu.dot_dimension_numbers<[1], [0], [0], [1], [0, 0, 1, 1], [], []>} : vector<1x32xf32>, vector<32x32xf32>, vector<1x32xf32> -> vector<1x32xf32>
    %72 = arith.addf %68, %71 : vector<1x32xf32>
    %c0_61 = arith.constant 0 : index
    %c0_62 = arith.constant 0 : index
    %73 = vector.load %arg15[%c0_61, %c0_62] : memref<1x32xf32, #tpu.memory_space<vmem>>, vector<1x32xf32>
    %74 = arith.addf %72, %73 : vector<1x32xf32>
    %cst_63 = arith.constant 0.000000e+00 : f32
    %75 = vector.broadcast %cst_63 : f32 to vector<1x32xf32>
    %76 = arith.maximumf %74, %75 : vector<1x32xf32>
    %c0_64 = arith.constant 0 : index
    %c0_65 = arith.constant 0 : index
    %77 = vector.load %arg16[%c0_64, %c0_65] : memref<32x32xf32, #tpu.memory_space<vmem>>, vector<32x32xf32>
    %cst_66 = arith.constant dense<0.000000e+00> : vector<1x32xf32>
    %78 = tpu.matmul %76, %77, %cst_66 {dimension_numbers = #tpu.dot_dimension_numbers<[1], [0], [0], [1], [0, 0, 1, 1], [], []>} : vector<1x32xf32>, vector<32x32xf32>, vector<1x32xf32> -> vector<1x32xf32>
    %c0_67 = arith.constant 0 : index
    %c0_68 = arith.constant 0 : index
    %79 = vector.load %arg17[%c0_67, %c0_68] : memref<1x32xf32, #tpu.memory_space<vmem>>, vector<1x32xf32>
    %80 = arith.addf %78, %79 : vector<1x32xf32>
    %cst_69 = arith.constant 0.000000e+00 : f32
    %81 = vector.broadcast %cst_69 : f32 to vector<1x32xf32>
    %82 = arith.maximumf %80, %81 : vector<1x32xf32>
    %c0_70 = arith.constant 0 : index
    %c0_71 = arith.constant 0 : index
    %83 = vector.load %arg18[%c0_70, %c0_71] : memref<32x3xf32, #tpu.memory_space<vmem>>, vector<32x3xf32>
    %cst_72 = arith.constant dense<0.000000e+00> : vector<1x3xf32>
    %84 = tpu.matmul %82, %83, %cst_72 {dimension_numbers = #tpu.dot_dimension_numbers<[1], [0], [0], [1], [0, 0, 1, 1], [], []>} : vector<1x32xf32>, vector<32x3xf32>, vector<1x3xf32> -> vector<1x3xf32>
    %c0_73 = arith.constant 0 : index
    %c0_74 = arith.constant 0 : index
    %85 = vector.load %arg19[%c0_73, %c0_74] : memref<1x3xf32, #tpu.memory_space<vmem>>, vector<1x3xf32>
    %86 = arith.addf %84, %85 : vector<1x3xf32>
    %c0_75 = arith.constant 0 : index
    %c0_76 = arith.constant 0 : index
    %c0_77 = arith.constant 0 : index
    %87 = vector.load %arg20[%c0_75, %c0_76, %c0_77] : memref<1x1x3xf32, #tpu.memory_space<vmem>>, vector<1x1x3xf32>
    %88 = vector.shape_cast %87 : vector<1x1x3xf32> to vector<1x3xf32>
    %89 = vector.shape_cast %86 : vector<1x3xf32> to vector<1x1x3xf32>
    tpu.vector_store %arg20[%c0_75, %c0_76, %c0_77], %89 {strides = array<i32>} : memref<1x1x3xf32, #tpu.memory_space<vmem>>, vector<1x1x3xf32>,
    return
  }
  func.func @transform_0(%arg0: i32) -> (i32, i32, i32) {
    %c0_i32 = arith.constant 0 : i32
    %c0_i32_0 = arith.constant 0 : i32
    %c0_i32_1 = arith.constant 0 : i32
    return %arg0, %c0_i32, %c0_i32_0 : i32, i32, i32
  }
  func.func @transform_1(%arg0: i32) -> (i32, i32, i32) {
    %c0_i32 = arith.constant 0 : i32
    %c0_i32_0 = arith.constant 0 : i32
    %c0_i32_1 = arith.constant 0 : i32
    %c0_i32_2 = arith.constant 0 : i32
    return %c0_i32, %c0_i32_0, %c0_i32_1 : i32, i32, i32
  }
  func.func @transform_2(%arg0: i32) -> (i32, i32) {
    %c0_i32 = arith.constant 0 : i32
    %c0_i32_0 = arith.constant 0 : i32
    %c0_i32_1 = arith.constant 0 : i32
    return %c0_i32, %c0_i32_0 : i32, i32
  }
  func.func @transform_3(%arg0: i32) -> (i32, i32) {
    %c0_i32 = arith.constant 0 : i32
    %c0_i32_0 = arith.constant 0 : i32
    %c0_i32_1 = arith.constant 0 : i32
    return %c0_i32, %c0_i32_0 : i32, i32
  }
  func.func @transform_4(%arg0: i32) -> (i32, i32) {
    %c0_i32 = arith.constant 0 : i32
    %c0_i32_0 = arith.constant 0 : i32
    %c0_i32_1 = arith.constant 0 : i32
    return %c0_i32, %c0_i32_0 : i32, i32
  }
  func.func @transform_5(%arg0: i32) -> (i32, i32) {
    %c0_i32 = arith.constant 0 : i32
    %c0_i32_0 = arith.constant 0 : i32
    %c0_i32_1 = arith.constant 0 : i32
    return %c0_i32, %c0_i32_0 : i32, i32
  }
  func.func @transform_6(%arg0: i32) -> (i32, i32) {
    %c0_i32 = arith.constant 0 : i32
    %c0_i32_0 = arith.constant 0 : i32
    %c0_i32_1 = arith.constant 0 : i32
    return %c0_i32, %c0_i32_0 : i32, i32
  }
  func.func @transform_7(%arg0: i32) -> (i32, i32, i32) {
    %c0_i32 = arith.constant 0 : i32
    %c0_i32_0 = arith.constant 0 : i32
    %c0_i32_1 = arith.constant 0 : i32
    %c0_i32_2 = arith.constant 0 : i32
    return %c0_i32, %c0_i32_0, %c0_i32_1 : i32, i32, i32
  }
  func.func @transform_8(%arg0: i32) -> (i32, i32) {
    %c0_i32 = arith.constant 0 : i32
    %c0_i32_0 = arith.constant 0 : i32
    %c0_i32_1 = arith.constant 0 : i32
    return %c0_i32, %c0_i32_0 : i32, i32
  }
  func.func @transform_9(%arg0: i32) -> (i32, i32) {
    %c0_i32 = arith.constant 0 : i32
    %c0_i32_0 = arith.constant 0 : i32
    %c0_i32_1 = arith.constant 0 : i32
    return %c0_i32, %c0_i32_0 : i32, i32
  }
  func.func @transform_10(%arg0: i32) -> (i32, i32) {
    %c0_i32 = arith.constant 0 : i32
    %c0_i32_0 = arith.constant 0 : i32
    %c0_i32_1 = arith.constant 0 : i32
    return %c0_i32, %c0_i32_0 : i32, i32
  }
  func.func @transform_11(%arg0: i32) -> (i32, i32) {
    %c0_i32 = arith.constant 0 : i32
    %c0_i32_0 = arith.constant 0 : i32
    %c0_i32_1 = arith.constant 0 : i32
    return %c0_i32, %c0_i32_0 : i32, i32
  }
  func.func @transform_12(%arg0: i32) -> (i32, i32) {
    %c0_i32 = arith.constant 0 : i32
    %c0_i32_0 = arith.constant 0 : i32
    %c0_i32_1 = arith.constant 0 : i32
    return %c0_i32, %c0_i32_0 : i32, i32
  }
  func.func @transform_13(%arg0: i32) -> (i32, i32) {
    %c0_i32 = arith.constant 0 : i32
    %c0_i32_0 = arith.constant 0 : i32
    %c0_i32_1 = arith.constant 0 : i32
    return %c0_i32, %c0_i32_0 : i32, i32
  }
  func.func @transform_14(%arg0: i32) -> (i32, i32) {
    %c0_i32 = arith.constant 0 : i32
    %c0_i32_0 = arith.constant 0 : i32
    %c0_i32_1 = arith.constant 0 : i32
    return %c0_i32, %c0_i32_0 : i32, i32
  }
  func.func @transform_15(%arg0: i32) -> (i32, i32) {
    %c0_i32 = arith.constant 0 : i32
    %c0_i32_0 = arith.constant 0 : i32
    %c0_i32_1 = arith.constant 0 : i32
    return %c0_i32, %c0_i32_0 : i32, i32
  }
  func.func @transform_16(%arg0: i32) -> (i32, i32) {
    %c0_i32 = arith.constant 0 : i32
    %c0_i32_0 = arith.constant 0 : i32
    %c0_i32_1 = arith.constant 0 : i32
    return %c0_i32, %c0_i32_0 : i32, i32
  }
  func.func @transform_17(%arg0: i32) -> (i32, i32) {
    %c0_i32 = arith.constant 0 : i32
    %c0_i32_0 = arith.constant 0 : i32
    %c0_i32_1 = arith.constant 0 : i32
    return %c0_i32, %c0_i32_0 : i32, i32
  }
  func.func @transform_18(%arg0: i32) -> (i32, i32) {
    %c0_i32 = arith.constant 0 : i32
    %c0_i32_0 = arith.constant 0 : i32
    %c0_i32_1 = arith.constant 0 : i32
    return %c0_i32, %c0_i32_0 : i32, i32
  }
  func.func @transform_19(%arg0: i32) -> (i32, i32, i32) {
    %c0_i32 = arith.constant 0 : i32
    %c0_i32_0 = arith.constant 0 : i32
    %c0_i32_1 = arith.constant 0 : i32
    return %arg0, %c0_i32, %c0_i32_0 : i32, i32, i32
  }
}

</mosaic_0001>

<llo_original>
// kernel: tpu_custom_call.1
$region0: #{tpu_custom_call.1}
  #allocation0 [shape = 'u32[]', space=smem, size = 0x4, offset = 0x4, fixed_abs, tag = 'smem constant byte address 0x4 - core index']
  #allocation1 [shape = 'u32[144,128]{1,0:T(1,128)}', space=vmem, size = 0x12000, scoped, tag = 'internal scratch']
  %s0 = inlined_call_operand.vmem [shape: f32[2,16,64], index: 0, kind: input, shape index: {}]
  %s1 = inlined_call_operand.vmem [shape: f32[3,64,112], index: 1, kind: input, shape index: {}]
  %s2 = inlined_call_operand.vmem [shape: f32[1,112], index: 2, kind: input, shape index: {}]
  %s3 = inlined_call_operand.vmem [shape: f32[7,14], index: 3, kind: input, shape index: {}]
  %s4 = inlined_call_operand.vmem [shape: f32[7,14], index: 4, kind: input, shape index: {}]
  %s5 = inlined_call_operand.vmem [shape: f32[112,56], index: 5, kind: input, shape index: {}]
  %s6 = inlined_call_operand.vmem [shape: f32[112,56], index: 6, kind: input, shape index: {}]
  %s7 = inlined_call_operand.vmem [shape: f32[3,56,80], index: 7, kind: input, shape index: {}]
  %s8 = inlined_call_operand.vmem [shape: f32[1,80], index: 8, kind: input, shape index: {}]
  %s9 = inlined_call_operand.vmem [shape: f32[2,5], index: 9, kind: input, shape index: {}]
  %s10 = inlined_call_operand.vmem [shape: f32[2,5], index: 10, kind: input, shape index: {}]
  %s11 = inlined_call_operand.vmem [shape: f32[80,32], index: 11, kind: input, shape index: {}]
  %s12 = inlined_call_operand.vmem [shape: f32[80,32], index: 12, kind: input, shape index: {}]
  %s13 = inlined_call_operand.vmem [shape: f32[64,32], index: 13, kind: input, shape index: {}]
  %s14 = inlined_call_operand.vmem [shape: f32[1,32], index: 14, kind: input, shape index: {}]
  %s15 = inlined_call_operand.vmem [shape: f32[32,32], index: 15, kind: input, shape index: {}]
  %s16 = inlined_call_operand.vmem [shape: f32[1,32], index: 16, kind: input, shape index: {}]
  %s17 = inlined_call_operand.vmem [shape: f32[32,3], index: 17, kind: input, shape index: {}]
  %s18 = inlined_call_operand.vmem [shape: f32[1,3], index: 18, kind: input, shape index: {}]
  %s19 = inlined_call_operand.hbm [shape: f32[2,1,3], index: 19, kind: output, shape index: {}]
  %s20 = sld [smem:[#allocation0]]
  $region109: #{tpu_custom_call.1} parent=0
    _
  %s22 = ssub.s32 1, %s20
  %s23 = scalar_select 0, %s22, %s20
  $region1: #{tpu_custom_call.1} parent=0
    #allocation2 [shape = 'u8[1024]{0}', space=vmem, size = 0x400, scoped, tag = 'output window, operand 0']
    #allocation3 [shape = 's32[2]{0}', space=sflag, size = 0x8, scoped, tag = 'scoped memory for tpu_custom_call.1']
    %24 = vsyncpa [#allocation3], 0
    %s25 = scalar_lea.sflag [#allocation3], 1
    %26 = vsyncpa %s25, 0
    loop: start=0, step=1, limit=4
    $region2: #{tpu_custom_call.1} parent=1 // loop_pre_header
      _
    $region3: #{tpu_custom_call.1} parent=1 // loop_header
      %s28 = sphi 0, %s32
      %p29 = scmp.ge.s32.totalorder %s28, 4
      %s38 = sphi 0, %s40
      %s41 = sphi 0, %s38
      %s42 = sphi 0, %s41
      %s58 = sphi 0, %s42
      %s62 = sphi 0, %s62
      %s64 = sphi 0, %s62
      %s65 = sphi 0, %s64
      %s79 = sphi 0, %s65
      %s83 = sphi 0, %s83
      %s85 = sphi 0, %s83
      %s86 = sphi 0, %s85
      %s100 = sphi 0, %s86
      %s104 = sphi 0, %s104
      %s106 = sphi 0, %s104
      %s107 = sphi 0, %s106
      %s121 = sphi 0, %s107
      %s125 = sphi 0, %s125
      %s127 = sphi 0, %s125
      %s128 = sphi 0, %s127
      %s142 = sphi 0, %s128
      %s146 = sphi 0, %s146
      %s148 = sphi 0, %s146
      %s149 = sphi 0, %s148
      %s163 = sphi 0, %s149
      %s167 = sphi 0, %s167
      %s169 = sphi 0, %s167
      %s170 = sphi 0, %s169
      %s184 = sphi 0, %s170
      %s188 = sphi 0, %s188
      %s190 = sphi 0, %s188
      %s191 = sphi 0, %s190
      %s205 = sphi 0, %s191
      %s209 = sphi 0, %s209
      %s211 = sphi 0, %s209
      %s212 = sphi 0, %s211
      %s226 = sphi 0, %s212
      %s230 = sphi 0, %s230
      %s232 = sphi 0, %s230
      %s233 = sphi 0, %s232
      %s247 = sphi 0, %s233
      %s251 = sphi 0, %s251
      %s253 = sphi 0, %s251
      %s254 = sphi 0, %s253
      %s268 = sphi 0, %s254
      %s272 = sphi 0, %s272
      %s274 = sphi 0, %s272
      %s275 = sphi 0, %s274
      %s289 = sphi 0, %s275
      %s293 = sphi 0, %s293
      %s295 = sphi 0, %s293
      %s296 = sphi 0, %s295
      %s310 = sphi 0, %s296
      %s314 = sphi 0, %s314
      %s316 = sphi 0, %s314
      %s317 = sphi 0, %s316
      %s331 = sphi 0, %s317
      %s335 = sphi 0, %s335
      %s337 = sphi 0, %s335
      %s338 = sphi 0, %s337
      %s352 = sphi 0, %s338
      %s356 = sphi 0, %s356
      %s358 = sphi 0, %s356
      %s359 = sphi 0, %s358
      %s373 = sphi 0, %s359
      %s377 = sphi 0, %s377
      %s379 = sphi 0, %s377
      %s380 = sphi 0, %s379
      %s394 = sphi 0, %s380
      %s398 = sphi 0, %s398
      %s400 = sphi 0, %s398
      %s401 = sphi 0, %s400
      %s415 = sphi 0, %s401
      %s419 = sphi 0, %s419
      %s421 = sphi 0, %s419
      %s422 = sphi 0, %s421
      %s436 = sphi 0, %s422
      %s442 = sphi 0, %s444
      %s445 = sphi 0, %s442
      %s446 = sphi 0, %s445
      %s462 = sphi 0, %s446
    $region4: #{tpu_custom_call.1} parent=1 // loop_header_branch
      %31 = sbr.rel (%p29) target = $region8
    $region5: #{tpu_custom_call.1} parent=1 // loop_body
      %s33 = ssub.s32 %s28, 1
      %s34 = ssub.s32 %s28, 2
      %s35 = sadd.s32 %s28, 1
      %s36 = ssub.s32 %s28, %s35
      %p37 = scmp.eq.s32.totalorder %s36, 0
      %s39 = sadd.s32 %s38, 1
      %s40 = scalar_select %p37, %s38, %s39
      %p43 = pneg %p37
      %p44 = scmp.eq.s32.totalorder %s28, 1
      %p45 = por %p43, %p44
      %p46 = scmp.ne.s32.totalorder %s38, %s41
      %p47 = scmp.eq.s32.totalorder %s28, 0
      %p48 = por %p46, %p47
      %p49 = scmp.ne.s32.totalorder %s38, %s41
      %p50 = scmp.eq.s32.totalorder %s33, 1
      %p51 = por %p49, %p50
      %p52 = scmp.ne.s32.totalorder %s41, %s42
      %p53 = scmp.eq.s32.totalorder %s33, 0
      %p54 = por %p52, %p53
      %p55 = scmp.ne.s32.totalorder %s41, %s42
      %p56 = scmp.eq.s32.totalorder %s34, 1
      %p57 = por %p55, %p56
      %p59 = scmp.ne.s32.totalorder %s42, %s58
      %p60 = scmp.eq.s32.totalorder %s34, 0
      %p61 = por %p59, %p60
      %s63 = sadd.s32 %s62, 1
      %p66 = scmp.eq.s32.totalorder %s28, 1
      %p67 = scmp.ne.s32.totalorder %s62, %s64
      %p68 = scmp.eq.s32.totalorder %s28, 0
      %p69 = por %p67, %p68
      %p70 = scmp.ne.s32.totalorder %s62, %s64
      %p71 = scmp.eq.s32.totalorder %s33, 1
      %p72 = por %p70, %p71
      %p73 = scmp.ne.s32.totalorder %s64, %s65
      %p74 = scmp.eq.s32.totalorder %s33, 0
      %p75 = por %p73, %p74
      %p76 = scmp.ne.s32.totalorder %s64, %s65
      %p77 = scmp.eq.s32.totalorder %s34, 1
      %p78 = por %p76, %p77
      %p80 = scmp.ne.s32.totalorder %s65, %s79
      %p81 = scmp.eq.s32.totalorder %s34, 0
      %p82 = por %p80, %p81
      %s84 = sadd.s32 %s83, 1
      %p87 = scmp.eq.s32.totalorder %s28, 1
      %p88 = scmp.ne.s32.totalorder %s83, %s85
      %p89 = scmp.eq.s32.totalorder %s28, 0
      %p90 = por %p88, %p89
      %p91 = scmp.ne.s32.totalorder %s83, %s85
      %p92 = scmp.eq.s32.totalorder %s33, 1
      %p93 = por %p91, %p92
      %p94 = scmp.ne.s32.totalorder %s85, %s86
      %p95 = scmp.eq.s32.totalorder %s33, 0
      %p96 = por %p94, %p95
      %p97 = scmp.ne.s32.totalorder %s85, %s86
      %p98 = scmp.eq.s32.totalorder %s34, 1
      %p99 = por %p97, %p98
      %p101 = scmp.ne.s32.totalorder %s86, %s100
      %p102 = scmp.eq.s32.totalorder %s34, 0
      %p103 = por %p101, %p102
      %s105 = sadd.s32 %s104, 1
      %p108 = scmp.eq.s32.totalorder %s28, 1
      %p109 = scmp.ne.s32.totalorder %s104, %s106
      %p110 = scmp.eq.s32.totalorder %s28, 0
      %p111 = por %p109, %p110
      %p112 = scmp.ne.s32.totalorder %s104, %s106
      %p113 = scmp.eq.s32.totalorder %s33, 1
      %p114 = por %p112, %p113
      %p115 = scmp.ne.s32.totalorder %s106, %s107
      %p116 = scmp.eq.s32.totalorder %s33, 0
      %p117 = por %p115, %p116
      %p118 = scmp.ne.s32.totalorder %s106, %s107
      %p119 = scmp.eq.s32.totalorder %s34, 1
      %p120 = por %p118, %p119
      %p122 = scmp.ne.s32.totalorder %s107, %s121
      %p123 = scmp.eq.s32.totalorder %s34, 0
      %p124 = por %p122, %p123
      %s126 = sadd.s32 %s125, 1
      %p129 = scmp.eq.s32.totalorder %s28, 1
      %p130 = scmp.ne.s32.totalorder %s125, %s127
      %p131 = scmp.eq.s32.totalorder %s28, 0
      %p132 = por %p130, %p131
      %p133 = scmp.ne.s32.totalorder %s125, %s127
      %p134 = scmp.eq.s32.totalorder %s33, 1
      %p135 = por %p133, %p134
      %p136 = scmp.ne.s32.totalorder %s127, %s128
      %p137 = scmp.eq.s32.totalorder %s33, 0
      %p138 = por %p136, %p137
      %p139 = scmp.ne.s32.totalorder %s127, %s128
      %p140 = scmp.eq.s32.totalorder %s34, 1
      %p141 = por %p139, %p140
      %p143 = scmp.ne.s32.totalorder %s128, %s142
      %p144 = scmp.eq.s32.totalorder %s34, 0
      %p145 = por %p143, %p144
      %s147 = sadd.s32 %s146, 1
      %p150 = scmp.eq.s32.totalorder %s28, 1
      %p151 = scmp.ne.s32.totalorder %s146, %s148
      %p152 = scmp.eq.s32.totalorder %s28, 0
      %p153 = por %p151, %p152
      %p154 = scmp.ne.s32.totalorder %s146, %s148
      %p155 = scmp.eq.s32.totalorder %s33, 1
      %p156 = por %p154, %p155
      %p157 = scmp.ne.s32.totalorder %s148, %s149
      %p158 = scmp.eq.s32.totalorder %s33, 0
      %p159 = por %p157, %p158
      %p160 = scmp.ne.s32.totalorder %s148, %s149
      %p161 = scmp.eq.s32.totalorder %s34, 1
      %p162 = por %p160, %p161
      %p164 = scmp.ne.s32.totalorder %s149, %s163
      %p165 = scmp.eq.s32.totalorder %s34, 0
      %p166 = por %p164, %p165
      %s168 = sadd.s32 %s167, 1
      %p171 = scmp.eq.s32.totalorder %s28, 1
      %p172 = scmp.ne.s32.totalorder %s167, %s169
      %p173 = scmp.eq.s32.totalorder %s28, 0
      %p174 = por %p172, %p173
      %p175 = scmp.ne.s32.totalorder %s167, %s169
      %p176 = scmp.eq.s32.totalorder %s33, 1
      %p177 = por %p175, %p176
      %p178 = scmp.ne.s32.totalorder %s169, %s170
      %p179 = scmp.eq.s32.totalorder %s33, 0
      %p180 = por %p178, %p179
      %p181 = scmp.ne.s32.totalorder %s169, %s170
      %p182 = scmp.eq.s32.totalorder %s34, 1
      %p183 = por %p181, %p182
      %p185 = scmp.ne.s32.totalorder %s170, %s184
      %p186 = scmp.eq.s32.totalorder %s34, 0
      %p187 = por %p185, %p186
      %s189 = sadd.s32 %s188, 1
      %p192 = scmp.eq.s32.totalorder %s28, 1
      %p193 = scmp.ne.s32.totalorder %s188, %s190
      %p194 = scmp.eq.s32.totalorder %s28, 0
      %p195 = por %p193, %p194
      %p196 = scmp.ne.s32.totalorder %s188, %s190
      %p197 = scmp.eq.s32.totalorder %s33, 1
      %p198 = por %p196, %p197
      %p199 = scmp.ne.s32.totalorder %s190, %s191
      %p200 = scmp.eq.s32.totalorder %s33, 0
      %p201 = por %p199, %p200
      %p202 = scmp.ne.s32.totalorder %s190, %s191
      %p203 = scmp.eq.s32.totalorder %s34, 1
      %p204 = por %p202, %p203
      %p206 = scmp.ne.s32.totalorder %s191, %s205
      %p207 = scmp.eq.s32.totalorder %s34, 0
      %p208 = por %p206, %p207
      %s210 = sadd.s32 %s209, 1
      %p213 = scmp.eq.s32.totalorder %s28, 1
      %p214 = scmp.ne.s32.totalorder %s209, %s211
      %p215 = scmp.eq.s32.totalorder %s28, 0
      %p216 = por %p214, %p215
      %p217 = scmp.ne.s32.totalorder %s209, %s211
      %p218 = scmp.eq.s32.totalorder %s33, 1
      %p219 = por %p217, %p218
      %p220 = scmp.ne.s32.totalorder %s211, %s212
      %p221 = scmp.eq.s32.totalorder %s33, 0
      %p222 = por %p220, %p221
      %p223 = scmp.ne.s32.totalorder %s211, %s212
      %p224 = scmp.eq.s32.totalorder %s34, 1
      %p225 = por %p223, %p224
      %p227 = scmp.ne.s32.totalorder %s212, %s226
      %p228 = scmp.eq.s32.totalorder %s34, 0
      %p229 = por %p227, %p228
      %s231 = sadd.s32 %s230, 1
      %p234 = scmp.eq.s32.totalorder %s28, 1
      %p235 = scmp.ne.s32.totalorder %s230, %s232
      %p236 = scmp.eq.s32.totalorder %s28, 0
      %p237 = por %p235, %p236
      %p238 = scmp.ne.s32.totalorder %s230, %s232
      %p239 = scmp.eq.s32.totalorder %s33, 1
      %p240 = por %p238, %p239
      %p241 = scmp.ne.s32.totalorder %s232, %s233
      %p242 = scmp.eq.s32.totalorder %s33, 0
      %p243 = por %p241, %p242
      %p244 = scmp.ne.s32.totalorder %s232, %s233
      %p245 = scmp.eq.s32.totalorder %s34, 1
      %p246 = por %p244, %p245
      %p248 = scmp.ne.s32.totalorder %s233, %s247
      %p249 = scmp.eq.s32.totalorder %s34, 0
      %p250 = por %p248, %p249
      %s252 = sadd.s32 %s251, 1
      %p255 = scmp.eq.s32.totalorder %s28, 1
      %p256 = scmp.ne.s32.totalorder %s251, %s253
      %p257 = scmp.eq.s32.totalorder %s28, 0
      %p258 = por %p256, %p257
      %p259 = scmp.ne.s32.totalorder %s251, %s253
      %p260 = scmp.eq.s32.totalorder %s33, 1
      %p261 = por %p259, %p260
      %p262 = scmp.ne.s32.totalorder %s253, %s254
      %p263 = scmp.eq.s32.totalorder %s33, 0
      %p264 = por %p262, %p263
      %p265 = scmp.ne.s32.totalorder %s253, %s254
      %p266 = scmp.eq.s32.totalorder %s34, 1
      %p267 = por %p265, %p266
      %p269 = scmp.ne.s32.totalorder %s254, %s268
      %p270 = scmp.eq.s32.totalorder %s34, 0
      %p271 = por %p269, %p270
      %s273 = sadd.s32 %s272, 1
      %p276 = scmp.eq.s32.totalorder %s28, 1
      %p277 = scmp.ne.s32.totalorder %s272, %s274
      %p278 = scmp.eq.s32.totalorder %s28, 0
      %p279 = por %p277, %p278
      %p280 = scmp.ne.s32.totalorder %s272, %s274
      %p281 = scmp.eq.s32.totalorder %s33, 1
      %p282 = por %p280, %p281
      %p283 = scmp.ne.s32.totalorder %s274, %s275
      %p284 = scmp.eq.s32.totalorder %s33, 0
      %p285 = por %p283, %p284
      %p286 = scmp.ne.s32.totalorder %s274, %s275
      %p287 = scmp.eq.s32.totalorder %s34, 1
      %p288 = por %p286, %p287
      %p290 = scmp.ne.s32.totalorder %s275, %s289
      %p291 = scmp.eq.s32.totalorder %s34, 0
      %p292 = por %p290, %p291
      %s294 = sadd.s32 %s293, 1
      %p297 = scmp.eq.s32.totalorder %s28, 1
      %p298 = scmp.ne.s32.totalorder %s293, %s295
      %p299 = scmp.eq.s32.totalorder %s28, 0
      %p300 = por %p298, %p299
      %p301 = scmp.ne.s32.totalorder %s293, %s295
      %p302 = scmp.eq.s32.totalorder %s33, 1
      %p303 = por %p301, %p302
      %p304 = scmp.ne.s32.totalorder %s295, %s296
      %p305 = scmp.eq.s32.totalorder %s33, 0
      %p306 = por %p304, %p305
      %p307 = scmp.ne.s32.totalorder %s295, %s296
      %p308 = scmp.eq.s32.totalorder %s34, 1
      %p309 = por %p307, %p308
      %p311 = scmp.ne.s32.totalorder %s296, %s310
      %p312 = scmp.eq.s32.totalorder %s34, 0
      %p313 = por %p311, %p312
      %s315 = sadd.s32 %s314, 1
      %p318 = scmp.eq.s32.totalorder %s28, 1
      %p319 = scmp.ne.s32.totalorder %s314, %s316
      %p320 = scmp.eq.s32.totalorder %s28, 0
      %p321 = por %p319, %p320
      %p322 = scmp.ne.s32.totalorder %s314, %s316
      %p323 = scmp.eq.s32.totalorder %s33, 1
      %p324 = por %p322, %p323
      %p325 = scmp.ne.s32.totalorder %s316, %s317
      %p326 = scmp.eq.s32.totalorder %s33, 0
      %p327 = por %p325, %p326
      %p328 = scmp.ne.s32.totalorder %s316, %s317
      %p329 = scmp.eq.s32.totalorder %s34, 1
      %p330 = por %p328, %p329
      %p332 = scmp.ne.s32.totalorder %s317, %s331
      %p333 = scmp.eq.s32.totalorder %s34, 0
      %p334 = por %p332, %p333
      %s336 = sadd.s32 %s335, 1
      %p339 = scmp.eq.s32.totalorder %s28, 1
      %p340 = scmp.ne.s32.totalorder %s335, %s337
      %p341 = scmp.eq.s32.totalorder %s28, 0
      %p342 = por %p340, %p341
      %p343 = scmp.ne.s32.totalorder %s335, %s337
      %p344 = scmp.eq.s32.totalorder %s33, 1
      %p345 = por %p343, %p344
      %p346 = scmp.ne.s32.totalorder %s337, %s338
      %p347 = scmp.eq.s32.totalorder %s33, 0
      %p348 = por %p346, %p347
      %p349 = scmp.ne.s32.totalorder %s337, %s338
      %p350 = scmp.eq.s32.totalorder %s34, 1
      %p351 = por %p349, %p350
      %p353 = scmp.ne.s32.totalorder %s338, %s352
      %p354 = scmp.eq.s32.totalorder %s34, 0
      %p355 = por %p353, %p354
      %s357 = sadd.s32 %s356, 1
      %p360 = scmp.eq.s32.totalorder %s28, 1
      %p361 = scmp.ne.s32.totalorder %s356, %s358
      %p362 = scmp.eq.s32.totalorder %s28, 0
      %p363 = por %p361, %p362
      %p364 = scmp.ne.s32.totalorder %s356, %s358
      %p365 = scmp.eq.s32.totalorder %s33, 1
      %p366 = por %p364, %p365
      %p367 = scmp.ne.s32.totalorder %s358, %s359
      %p368 = scmp.eq.s32.totalorder %s33, 0
      %p369 = por %p367, %p368
      %p370 = scmp.ne.s32.totalorder %s358, %s359
      %p371 = scmp.eq.s32.totalorder %s34, 1
      %p372 = por %p370, %p371
      %p374 = scmp.ne.s32.totalorder %s359, %s373
      %p375 = scmp.eq.s32.totalorder %s34, 0
      %p376 = por %p374, %p375
      %s378 = sadd.s32 %s377, 1
      %p381 = scmp.eq.s32.totalorder %s28, 1
      %p382 = scmp.ne.s32.totalorder %s377, %s379
      %p383 = scmp.eq.s32.totalorder %s28, 0
      %p384 = por %p382, %p383
      %p385 = scmp.ne.s32.totalorder %s377, %s379
      %p386 = scmp.eq.s32.totalorder %s33, 1
      %p387 = por %p385, %p386
      %p388 = scmp.ne.s32.totalorder %s379, %s380
      %p389 = scmp.eq.s32.totalorder %s33, 0
      %p390 = por %p388, %p389
      %p391 = scmp.ne.s32.totalorder %s379, %s380
      %p392 = scmp.eq.s32.totalorder %s34, 1
      %p393 = por %p391, %p392
      %p395 = scmp.ne.s32.totalorder %s380, %s394
      %p396 = scmp.eq.s32.totalorder %s34, 0
      %p397 = por %p395, %p396
      %s399 = sadd.s32 %s398, 1
      %p402 = scmp.eq.s32.totalorder %s28, 1
      %p403 = scmp.ne.s32.totalorder %s398, %s400
      %p404 = scmp.eq.s32.totalorder %s28, 0
      %p405 = por %p403, %p404
      %p406 = scmp.ne.s32.totalorder %s398, %s400
      %p407 = scmp.eq.s32.totalorder %s33, 1
      %p408 = por %p406, %p407
      %p409 = scmp.ne.s32.totalorder %s400, %s401
      %p410 = scmp.eq.s32.totalorder %s33, 0
      %p411 = por %p409, %p410
      %p412 = scmp.ne.s32.totalorder %s400, %s401
      %p413 = scmp.eq.s32.totalorder %s34, 1
      %p414 = por %p412, %p413
      %p416 = scmp.ne.s32.totalorder %s401, %s415
      %p417 = scmp.eq.s32.totalorder %s34, 0
      %p418 = por %p416, %p417
      %s420 = sadd.s32 %s419, 1
      %p423 = scmp.eq.s32.totalorder %s28, 1
      %p424 = scmp.ne.s32.totalorder %s419, %s421
      %p425 = scmp.eq.s32.totalorder %s28, 0
      %p426 = por %p424, %p425
      %p427 = scmp.ne.s32.totalorder %s419, %s421
      %p428 = scmp.eq.s32.totalorder %s33, 1
      %p429 = por %p427, %p428
      %p430 = scmp.ne.s32.totalorder %s421, %s422
      %p431 = scmp.eq.s32.totalorder %s33, 0
      %p432 = por %p430, %p431
      %p433 = scmp.ne.s32.totalorder %s421, %s422
      %p434 = scmp.eq.s32.totalorder %s34, 1
      %p435 = por %p433, %p434
      %p437 = scmp.ne.s32.totalorder %s422, %s436
      %p438 = scmp.eq.s32.totalorder %s34, 0
      %p439 = por %p437, %p438
      %s440 = ssub.s32 %s28, %s35
      %p441 = scmp.eq.s32.totalorder %s440, 0
      %s443 = sadd.s32 %s442, 1
      %s444 = scalar_select %p441, %s442, %s443
      %p447 = pneg %p441
      %p448 = scmp.eq.s32.totalorder %s28, 1
      %p449 = por %p447, %p448
      %p450 = scmp.ne.s32.totalorder %s442, %s445
      %p451 = scmp.eq.s32.totalorder %s28, 0
      %p452 = por %p450, %p451
      %p453 = scmp.ne.s32.totalorder %s442, %s445
      %p454 = scmp.eq.s32.totalorder %s33, 1
      %p455 = por %p453, %p454
      %p456 = scmp.ne.s32.totalorder %s445, %s446
      %p457 = scmp.eq.s32.totalorder %s33, 0
      %p458 = por %p456, %p457
      %p459 = scmp.ne.s32.totalorder %s445, %s446
      %p460 = scmp.eq.s32.totalorder %s34, 1
      %p461 = por %p459, %p460
      %p463 = scmp.ne.s32.totalorder %s446, %s462
      %p464 = scmp.eq.s32.totalorder %s34, 0
      %p465 = por %p463, %p464
      %p466 = scmp.le.s32.totalorder 1, %s28
      %p467 = scmp.lt.s32.totalorder %s28, 3
      %p468 = pnand %p466, %p467
      %p469 = pneg %p468
      // Predicated region
      $region9: #{tpu_custom_call.1} parent=5 // pred_check
        _
      $region10: #{tpu_custom_call.1} parent=5 // pred_check_branch
        %471 = sbr.rel (%p468) target = $region12
      $region11: #{tpu_custom_call.1} parent=5 // pred_region
        %s472 = ssub.s32 %s28, 1
        // Predicated region
        $region13: #{tpu_custom_call.1} parent=11 // pred_check
          %p473 = pneg %p75
        $region14: #{tpu_custom_call.1} parent=11 // pred_check_branch
          %475 = sbr.rel (%p473) target = $region16
        $region15: #{tpu_custom_call.1} parent=11 // pred_region
          _
        $region16: #{tpu_custom_call.1} parent=11 // pred_fallthru
          _
        // Predicated region
        $region17: #{tpu_custom_call.1} parent=11 // pred_check
          %p476 = pneg %p96
        $region18: #{tpu_custom_call.1} parent=11 // pred_check_branch
          %478 = sbr.rel (%p476) target = $region20
        $region19: #{tpu_custom_call.1} parent=11 // pred_region
          _
        $region20: #{tpu_custom_call.1} parent=11 // pred_fallthru
          _
        // Predicated region
        $region21: #{tpu_custom_call.1} parent=11 // pred_check
          %p479 = pneg %p117
        $region22: #{tpu_custom_call.1} parent=11 // pred_check_branch
          %481 = sbr.rel (%p479) target = $region24
        $region23: #{tpu_custom_call.1} parent=11 // pred_region
          _
        $region24: #{tpu_custom_call.1} parent=11 // pred_fallthru
          _
        // Predicated region
        $region25: #{tpu_custom_call.1} parent=11 // pred_check
          %p482 = pneg %p138
        $region26: #{tpu_custom_call.1} parent=11 // pred_check_branch
          %484 = sbr.rel (%p482) target = $region28
        $region27: #{tpu_custom_call.1} parent=11 // pred_region
          _
        $region28: #{tpu_custom_call.1} parent=11 // pred_fallthru
          _
        // Predicated region
        $region29: #{tpu_custom_call.1} parent=11 // pred_check
          %p485 = pneg %p159
        $region30: #{tpu_custom_call.1} parent=11 // pred_check_branch
          %487 = sbr.rel (%p485) target = $region32
        $region31: #{tpu_custom_call.1} parent=11 // pred_region
          _
        $region32: #{tpu_custom_call.1} parent=11 // pred_fallthru
          _
        // Predicated region
        $region33: #{tpu_custom_call.1} parent=11 // pred_check
          %p488 = pneg %p180
        $region34: #{tpu_custom_call.1} parent=11 // pred_check_branch
          %490 = sbr.rel (%p488) target = $region36
        $region35: #{tpu_custom_call.1} parent=11 // pred_region
          _
        $region36: #{tpu_custom_call.1} parent=11 // pred_fallthru
          _
        // Predicated region
        $region37: #{tpu_custom_call.1} parent=11 // pred_check
          %p491 = pneg %p201
        $region38: #{tpu_custom_call.1} parent=11 // pred_check_branch
          %493 = sbr.rel (%p491) target = $region40
        $region39: #{tpu_custom_call.1} parent=11 // pred_region
          _
        $region40: #{tpu_custom_call.1} parent=11 // pred_fallthru
          _
        // Predicated region
        $region41: #{tpu_custom_call.1} parent=11 // pred_check
          %p494 = pneg %p222
        $region42: #{tpu_custom_call.1} parent=11 // pred_check_branch
          %496 = sbr.rel (%p494) target = $region44
        $region43: #{tpu_custom_call.1} parent=11 // pred_region
          _
        $region44: #{tpu_custom_call.1} parent=11 // pred_fallthru
          _
        // Predicated region
        $region45: #{tpu_custom_call.1} parent=11 // pred_check
          %p497 = pneg %p243
        $region46: #{tpu_custom_call.1} parent=11 // pred_check_branch
          %499 = sbr.rel (%p497) target = $region48
        $region47: #{tpu_custom_call.1} parent=11 // pred_region
          _
        $region48: #{tpu_custom_call.1} parent=11 // pred_fallthru
          _
        // Predicated region
        $region49: #{tpu_custom_call.1} parent=11 // pred_check
          %p500 = pneg %p264
        $region50: #{tpu_custom_call.1} parent=11 // pred_check_branch
          %502 = sbr.rel (%p500) target = $region52
        $region51: #{tpu_custom_call.1} parent=11 // pred_region
          _
        $region52: #{tpu_custom_call.1} parent=11 // pred_fallthru
          _
        // Predicated region
        $region53: #{tpu_custom_call.1} parent=11 // pred_check
          %p503 = pneg %p285
        $region54: #{tpu_custom_call.1} parent=11 // pred_check_branch
          %505 = sbr.rel (%p503) target = $region56
        $region55: #{tpu_custom_call.1} parent=11 // pred_region
          _
        $region56: #{tpu_custom_call.1} parent=11 // pred_fallthru
          _
        // Predicated region
        $region57: #{tpu_custom_call.1} parent=11 // pred_check
          %p506 = pneg %p306
        $region58: #{tpu_custom_call.1} parent=11 // pred_check_branch
          %508 = sbr.rel (%p506) target = $region60
        $region59: #{tpu_custom_call.1} parent=11 // pred_region
          _
        $region60: #{tpu_custom_call.1} parent=11 // pred_fallthru
          _
        // Predicated region
        $region61: #{tpu_custom_call.1} parent=11 // pred_check
          %p509 = pneg %p327
        $region62: #{tpu_custom_call.1} parent=11 // pred_check_branch
          %511 = sbr.rel (%p509) target = $region64
        $region63: #{tpu_custom_call.1} parent=11 // pred_region
          _
        $region64: #{tpu_custom_call.1} parent=11 // pred_fallthru
          _
        // Predicated region
        $region65: #{tpu_custom_call.1} parent=11 // pred_check
          %p512 = pneg %p348
        $region66: #{tpu_custom_call.1} parent=11 // pred_check_branch
          %514 = sbr.rel (%p512) target = $region68
        $region67: #{tpu_custom_call.1} parent=11 // pred_region
          _
        $region68: #{tpu_custom_call.1} parent=11 // pred_fallthru
          _
        // Predicated region
        $region69: #{tpu_custom_call.1} parent=11 // pred_check
          %p515 = pneg %p369
        $region70: #{tpu_custom_call.1} parent=11 // pred_check_branch
          %517 = sbr.rel (%p515) target = $region72
        $region71: #{tpu_custom_call.1} parent=11 // pred_region
          _
        $region72: #{tpu_custom_call.1} parent=11 // pred_fallthru
          _
        // Predicated region
        $region73: #{tpu_custom_call.1} parent=11 // pred_check
          %p518 = pneg %p390
        $region74: #{tpu_custom_call.1} parent=11 // pred_check_branch
          %520 = sbr.rel (%p518) target = $region76
        $region75: #{tpu_custom_call.1} parent=11 // pred_region
          _
        $region76: #{tpu_custom_call.1} parent=11 // pred_fallthru
          _
        // Predicated region
        $region77: #{tpu_custom_call.1} parent=11 // pred_check
          %p521 = pneg %p411
        $region78: #{tpu_custom_call.1} parent=11 // pred_check_branch
          %523 = sbr.rel (%p521) target = $region80
        $region79: #{tpu_custom_call.1} parent=11 // pred_region
          _
        $region80: #{tpu_custom_call.1} parent=11 // pred_fallthru
          _
        // Predicated region
        $region81: #{tpu_custom_call.1} parent=11 // pred_check
          %p524 = pneg %p432
        $region82: #{tpu_custom_call.1} parent=11 // pred_check_branch
          %526 = sbr.rel (%p524) target = $region84
        $region83: #{tpu_custom_call.1} parent=11 // pred_region
          _
        $region84: #{tpu_custom_call.1} parent=11 // pred_fallthru
          _
      $region12: #{tpu_custom_call.1} parent=5 // pred_fallthru
        _
      %p527 = scmp.lt.s32.totalorder %s28, 2
      // Predicated region
      $region85: #{tpu_custom_call.1} parent=5 // pred_check
        %p528 = pneg %p527
      $region86: #{tpu_custom_call.1} parent=5 // pred_check_branch
        %530 = sbr.rel (%p528) target = $region88
      $region87: #{tpu_custom_call.1} parent=5 // pred_region
        // Predicated region
        $region89: #{tpu_custom_call.1} parent=87 // pred_check
          %p531 = pneg %p48
        $region90: #{tpu_custom_call.1} parent=87 // pred_check_branch
          %533 = sbr.rel (%p531) target = $region92
        $region91: #{tpu_custom_call.1} parent=87 // pred_region
          %p534 = scmp.lt.s32.totalorder %s28, 1
          %s535 = scalar_select %p534, %s28, 1
          %s536 = smul.addr %s535, 2
          %s537 = smul.addr %s536, 8
          %s538 = scalar_lea.vmem %s0, %s537
        $region92: #{tpu_custom_call.1} parent=87 // pred_fallthru
          _
      $region88: #{tpu_custom_call.1} parent=5 // pred_fallthru
        _
      %p539 = scmp.le.s32.totalorder 1, %s28
      %p540 = scmp.lt.s32.totalorder %s28, 3
      %p541 = pnand %p539, %p540
      %p542 = pneg %p541
      // Predicated region
      $region93: #{tpu_custom_call.1} parent=5 // pred_check
        _
      $region94: #{tpu_custom_call.1} parent=5 // pred_check_branch
        %544 = sbr.rel (%p541) target = $region96
      $region95: #{tpu_custom_call.1} parent=5 // pred_region
        %s545 = ssub.s32 %s28, 1
        %p546 = scmp.lt.s32.totalorder %s33, 1
        %s547 = scalar_select %p546, %s33, 1
        %s548 = smul.addr %s547, 2
        %s549 = smul.addr %s548, 8
        %s550 = scalar_lea.vmem %s0, %s549
        %p551 = pneg %p54
        %p552 = pneg %p51
        %p553 = pneg %p75
        %p554 = pneg %p72
        %p555 = pneg %p96
        %p556 = pneg %p93
        %p557 = pneg %p117
        %p558 = pneg %p114
        %p559 = pneg %p138
        %p560 = pneg %p135
        %p561 = pneg %p159
        %p562 = pneg %p156
        %p563 = pneg %p180
        %p564 = pneg %p177
        %p565 = pneg %p201
        %p566 = pneg %p198
        %p567 = pneg %p222
        %p568 = pneg %p219
        %p569 = pneg %p243
        %p570 = pneg %p240
        %p571 = pneg %p264
        %p572 = pneg %p261
        %p573 = pneg %p285
        %p574 = pneg %p282
        %p575 = pneg %p306
        %p576 = pneg %p303
        %p577 = pneg %p327
        %p578 = pneg %p324
        %p579 = pneg %p348
        %p580 = pneg %p345
        %p581 = pneg %p369
        %p582 = pneg %p366
        %p583 = pneg %p390
        %p584 = pneg %p387
        %p585 = pneg %p411
        %p586 = pneg %p408
        %p587 = pneg %p432
        %p588 = pneg %p429
        %p589 = pneg %p458
        %p590 = pneg %p455
        %s591 = sand.u32 %s445, 1
        %s592 = scalar_lea.sflag [#allocation3], %s591
        %s593 = sand.u32 %s445, 1
        %s594 = scalar_lea.vmem [#allocation2], %s593
        %p595 = scmp.lt.s32.totalorder %s33, 1
        %s596 = scalar_select %p595, %s33, 1
        %s597 = smul.addr %s596, 2
        %s598 = smul.addr %s597, 8
        %s599 = scalar_lea.vmem %s0, %s598
        %v600 = vld [vmem:[%s599] sm:$0xff]
        %v601 = vld [vmem:[%s599 + $0x8] sm:$0xff]
        %v602 = vld [vmem:[%s1] sm:$0xff]
        %v603 = vld [vmem:[%s1 + $0x8] sm:$0xff]
        %v604 = vld [vmem:[%s1 + $0x10] sm:$0xff]
        %v605 = vld [vmem:[%s1 + $0x18] sm:$0xff]
        %v606 = vld [vmem:[%s1 + $0x20] sm:$0xff]
        %v607 = vld [vmem:[%s1 + $0x28] sm:$0xff]
        %v608 = vld [vmem:[%s1 + $0x30] sm:$0xff]
        %v609 = vld [vmem:[%s1 + $0x38] sm:$0xff]
        %s610 = scalar_lea.vmem %s1, 64
        %v611 = vld [vmem:[%s610] sm:$0xff]
        %v612 = vld [vmem:[%s610 + $0x8] sm:$0xff]
        %v613 = vld [vmem:[%s610 + $0x10] sm:$0xff]
        %v614 = vld [vmem:[%s610 + $0x18] sm:$0xff]
        %v615 = vld [vmem:[%s610 + $0x20] sm:$0xff]
        %v616 = vld [vmem:[%s610 + $0x28] sm:$0xff]
        %v617 = vld [vmem:[%s610 + $0x30] sm:$0xff]
        %v618 = vld [vmem:[%s610 + $0x38] sm:$0xff]
        %vm621 = vcmask 1046528
        %v622 = vrot.slane %v600, 1
        %v623 = vrot.slane %v601, 1
        %v624 = vsel %vm621, %v622, %v623
        %vm625 = vcmask 523264
        %v626 = vsel %vm625, %v624, 0
        %v628 = vsel %vm625, %v623, 0
        %630 = vmatprep.subr.mxu0 0.0
        %631 = vmatpush1.msra.mxu0 0.0
        %632 = vmatprep.subr.mxu0 0.0
        %633 = vmatpush1.msra.mxu0 0.0
        %634 = vmatprep.subr.mxu0 0.0
        %635 = vmatpush1.msra.mxu0 0.0
        %636 = vmatprep.subr.mxu0 0.0
        %637 = vmatpush1.msra.mxu0 0.0
        %638 = vmatprep.subr.mxu0 0.0
        %639 = vmatpush1.msra.mxu0 0.0
        %640 = vmatprep.subr.mxu0 0.0
        %641 = vmatpush1.msra.mxu0 0.0
        %642 = vmatprep.subr.mxu0 0.0
        %643 = vmatpush1.msra.mxu0 0.0
        %644 = vmatprep.subr.mxu0 0.0
        %645 = vmatpush1.msra.mxu0 0.0
        %646 = vmatprep.subr.mxu0 0.0
        %647 = vmatpush1.msra.mxu0 %v618
        %648 = vmatprep.subr.mxu0 0.0
        %649 = vmatpush1.msra.mxu0 %v617
        %650 = vmatprep.subr.mxu0 0.0
        %651 = vmatpush1.msra.mxu0 %v616
        %652 = vmatprep.subr.mxu0 0.0
        %653 = vmatpush1.msra.mxu0 %v615
        %654 = vmatprep.subr.mxu0 0.0
        %655 = vmatpush1.msra.mxu0 %v614
        %656 = vmatprep.subr.mxu0 0.0
        %657 = vmatpush1.msra.mxu0 %v613
        %658 = vmatprep.subr.mxu0 0.0
        %659 = vmatpush1.msra.mxu0 %v612
        %660 = vmatprep.subr.mxu0 0.0
        %661 = vmatpush1.msra.mxu0 %v611
        %662 = vmatprep.subr.mxu0 0.0
        %663 = vmatpush2.msra.mxu0 0.0
        %664 = vmatprep.subr.mxu0 0.0
        %665 = vmatpush2.msra.mxu0 0.0
        %666 = vmatprep.subr.mxu0 0.0
        %667 = vmatpush2.msra.mxu0 0.0
        %668 = vmatprep.subr.mxu0 0.0
        %669 = vmatpush2.msra.mxu0 0.0
        %670 = vmatprep.subr.mxu0 0.0
        %671 = vmatpush2.msra.mxu0 0.0
        %672 = vmatprep.subr.mxu0 0.0
        %673 = vmatpush2.msra.mxu0 0.0
        %674 = vmatprep.subr.mxu0 0.0
        %675 = vmatpush2.msra.mxu0 0.0
        %676 = vmatprep.subr.mxu0 0.0
        %677 = vmatpush2.msra.mxu0 0.0
        %678 = vmatprep.subr.mxu0 0.0
        %679 = vmatpush2.msra.mxu0 0.0
        %680 = vmatprep.subr.mxu0 0.0
        %681 = vmatpush2.msra.mxu0 0.0
        %682 = vmatprep.subr.mxu0 0.0
        %683 = vmatpush2.msra.mxu0 0.0
        %684 = vmatprep.subr.mxu0 0.0
        %685 = vmatpush2.msra.mxu0 0.0
        %686 = vmatprep.subr.mxu0 0.0
        %687 = vmatpush2.msra.mxu0 0.0
        %688 = vmatprep.subr.mxu0 0.0
        %689 = vmatpush2.msra.mxu0 0.0
        %690 = vmatprep.subr.mxu0 0.0
        %691 = vmatpush2.msra.mxu0 0.0
        %692 = vmatprep.subr.mxu0 0.0
        %693 = vmatpush2.msra.mxu0 0.0
        %694 = vmatprep.mubr.f32.mxu0 0.0
        %695 = vmatmul.mubr.f32.gmra.mxu0 %v626
        %v696 = vpop.f32.mrf.mxu0
        %v697 = vadd.f32 0.0, %v696
        %v698 = vpop.f32.mrf.mxu0
        %699 = vmatprep.mubr.f32.mxu0 0.0
        %700 = vmatmul.mubr.f32.gmra.mxu0 %v628
        %v701 = vpop.f32.mrf.mxu0
        %v702 = vadd.f32 0.0, %v701
        %v703 = vpop.f32.mrf.mxu0
        %704 = vdwg.mxu0
        %v705 = vsel %vm625, %v600, 0
        %v707 = vsel %vm625, %v601, 0
        %709 = vmatprep.subr.mxu0 0.0
        %710 = vmatpush1.msra.mxu0 0.0
        %711 = vmatprep.subr.mxu0 0.0
        %712 = vmatpush1.msra.mxu0 0.0
        %713 = vmatprep.subr.mxu0 0.0
        %714 = vmatpush1.msra.mxu0 0.0
        %715 = vmatprep.subr.mxu0 0.0
        %716 = vmatpush1.msra.mxu0 0.0
        %717 = vmatprep.subr.mxu0 0.0
        %718 = vmatpush1.msra.mxu0 0.0
        %719 = vmatprep.subr.mxu0 0.0
        %720 = vmatpush1.msra.mxu0 0.0
        %721 = vmatprep.subr.mxu0 0.0
        %722 = vmatpush1.msra.mxu0 0.0
        %723 = vmatprep.subr.mxu0 0.0
        %724 = vmatpush1.msra.mxu0 0.0
        %725 = vmatprep.subr.mxu0 0.0
        %726 = vmatpush1.msra.mxu0 %v609
        %727 = vmatprep.subr.mxu0 0.0
        %728 = vmatpush1.msra.mxu0 %v608
        %729 = vmatprep.subr.mxu0 0.0
        %730 = vmatpush1.msra.mxu0 %v607
        %731 = vmatprep.subr.mxu0 0.0
        %732 = vmatpush1.msra.mxu0 %v606
        %733 = vmatprep.subr.mxu0 0.0
        %734 = vmatpush1.msra.mxu0 %v605
        %735 = vmatprep.subr.mxu0 0.0
        %736 = vmatpush1.msra.mxu0 %v604
        %737 = vmatprep.subr.mxu0 0.0
        %738 = vmatpush1.msra.mxu0 %v603
        %739 = vmatprep.subr.mxu0 0.0
        %740 = vmatpush1.msra.mxu0 %v602
        %741 = vmatprep.subr.mxu0 0.0
        %742 = vmatpush2.msra.mxu0 0.0
        %743 = vmatprep.subr.mxu0 0.0
        %744 = vmatpush2.msra.mxu0 0.0
        %745 = vmatprep.subr.mxu0 0.0
        %746 = vmatpush2.msra.mxu0 0.0
        %747 = vmatprep.subr.mxu0 0.0
        %748 = vmatpush2.msra.mxu0 0.0
        %749 = vmatprep.subr.mxu0 0.0
        %750 = vmatpush2.msra.mxu0 0.0
        %751 = vmatprep.subr.mxu0 0.0
        %752 = vmatpush2.msra.mxu0 0.0
        %753 = vmatprep.subr.mxu0 0.0
        %754 = vmatpush2.msra.mxu0 0.0
        %755 = vmatprep.subr.mxu0 0.0
        %756 = vmatpush2.msra.mxu0 0.0
        %757 = vmatprep.subr.mxu0 0.0
        %758 = vmatpush2.msra.mxu0 0.0
        %759 = vmatprep.subr.mxu0 0.0
        %760 = vmatpush2.msra.mxu0 0.0
        %761 = vmatprep.subr.mxu0 0.0
        %762 = vmatpush2.msra.mxu0 0.0
        %763 = vmatprep.subr.mxu0 0.0
        %764 = vmatpush2.msra.mxu0 0.0
        %765 = vmatprep.subr.mxu0 0.0
        %766 = vmatpush2.msra.mxu0 0.0
        %767 = vmatprep.subr.mxu0 0.0
        %768 = vmatpush2.msra.mxu0 0.0
        %769 = vmatprep.subr.mxu0 0.0
        %770 = vmatpush2.msra.mxu0 0.0
        %771 = vmatprep.subr.mxu0 0.0
        %772 = vmatpush2.msra.mxu0 0.0
        %773 = vmatprep.mubr.f32.mxu0 0.0
        %774 = vmatmul.mubr.f32.gmra.mxu0 %v705
        %v775 = vpop.f32.mrf.mxu0
        %v776 = vadd.f32 %v697, %v775
        %v777 = vpop.f32.mrf.mxu0
        %778 = vmatprep.mubr.f32.mxu0 0.0
        %779 = vmatmul.mubr.f32.gmra.mxu0 %v707
        %v780 = vpop.f32.mrf.mxu0
        %v781 = vadd.f32 %v702, %v780
        %v782 = vpop.f32.mrf.mxu0
        %783 = vdwg.mxu0
        %s784 = scalar_lea.vmem %s1, 128
        %v785 = vld [vmem:[%s784] sm:$0xff]
        %v786 = vld [vmem:[%s784 + $0x8] sm:$0xff]
        %v787 = vld [vmem:[%s784 + $0x10] sm:$0xff]
        %v788 = vld [vmem:[%s784 + $0x18] sm:$0xff]
        %v789 = vld [vmem:[%s784 + $0x20] sm:$0xff]
        %v790 = vld [vmem:[%s784 + $0x28] sm:$0xff]
        %v791 = vld [vmem:[%s784 + $0x30] sm:$0xff]
        %v792 = vld [vmem:[%s784 + $0x38] sm:$0xff]
        %vm793 = vcmask 1045504
        %v794 = vrot.slane %v600, 2
        %v795 = vrot.slane %v601, 2
        %v796 = vsel %vm793, %v794, %v795
        %v797 = vsel %vm625, %v796, 0
        %v799 = vsel %vm625, %v795, 0
        %801 = vmatprep.subr.mxu0 0.0
        %802 = vmatpush1.msra.mxu0 0.0
        %803 = vmatprep.subr.mxu0 0.0
        %804 = vmatpush1.msra.mxu0 0.0
        %805 = vmatprep.subr.mxu0 0.0
        %806 = vmatpush1.msra.mxu0 0.0
        %807 = vmatprep.subr.mxu0 0.0
        %808 = vmatpush1.msra.mxu0 0.0
        %809 = vmatprep.subr.mxu0 0.0
        %810 = vmatpush1.msra.mxu0 0.0
        %811 = vmatprep.subr.mxu0 0.0
        %812 = vmatpush1.msra.mxu0 0.0
        %813 = vmatprep.subr.mxu0 0.0
        %814 = vmatpush1.msra.mxu0 0.0
        %815 = vmatprep.subr.mxu0 0.0
        %816 = vmatpush1.msra.mxu0 0.0
        %817 = vmatprep.subr.mxu0 0.0
        %818 = vmatpush1.msra.mxu0 %v792
        %819 = vmatprep.subr.mxu0 0.0
        %820 = vmatpush1.msra.mxu0 %v791
        %821 = vmatprep.subr.mxu0 0.0
        %822 = vmatpush1.msra.mxu0 %v790
        %823 = vmatprep.subr.mxu0 0.0
        %824 = vmatpush1.msra.mxu0 %v789
        %825 = vmatprep.subr.mxu0 0.0
        %826 = vmatpush1.msra.mxu0 %v788
        %827 = vmatprep.subr.mxu0 0.0
        %828 = vmatpush1.msra.mxu0 %v787
        %829 = vmatprep.subr.mxu0 0.0
        %830 = vmatpush1.msra.mxu0 %v786
        %831 = vmatprep.subr.mxu0 0.0
        %832 = vmatpush1.msra.mxu0 %v785
        %833 = vmatprep.subr.mxu0 0.0
        %834 = vmatpush2.msra.mxu0 0.0
        %835 = vmatprep.subr.mxu0 0.0
        %836 = vmatpush2.msra.mxu0 0.0
        %837 = vmatprep.subr.mxu0 0.0
        %838 = vmatpush2.msra.mxu0 0.0
        %839 = vmatprep.subr.mxu0 0.0
        %840 = vmatpush2.msra.mxu0 0.0
        %841 = vmatprep.subr.mxu0 0.0
        %842 = vmatpush2.msra.mxu0 0.0
        %843 = vmatprep.subr.mxu0 0.0
        %844 = vmatpush2.msra.mxu0 0.0
        %845 = vmatprep.subr.mxu0 0.0
        %846 = vmatpush2.msra.mxu0 0.0
        %847 = vmatprep.subr.mxu0 0.0
        %848 = vmatpush2.msra.mxu0 0.0
        %849 = vmatprep.subr.mxu0 0.0
        %850 = vmatpush2.msra.mxu0 0.0
        %851 = vmatprep.subr.mxu0 0.0
        %852 = vmatpush2.msra.mxu0 0.0
        %853 = vmatprep.subr.mxu0 0.0
        %854 = vmatpush2.msra.mxu0 0.0
        %855 = vmatprep.subr.mxu0 0.0
        %856 = vmatpush2.msra.mxu0 0.0
        %857 = vmatprep.subr.mxu0 0.0
        %858 = vmatpush2.msra.mxu0 0.0
        %859 = vmatprep.subr.mxu0 0.0
        %860 = vmatpush2.msra.mxu0 0.0
        %861 = vmatprep.subr.mxu0 0.0
        %862 = vmatpush2.msra.mxu0 0.0
        %863 = vmatprep.subr.mxu0 0.0
        %864 = vmatpush2.msra.mxu0 0.0
        %865 = vmatprep.mubr.f32.mxu0 0.0
        %866 = vmatmul.mubr.f32.gmra.mxu0 %v797
        %v867 = vpop.f32.mrf.mxu0
        %v868 = vadd.f32 0.0, %v867
        %v869 = vpop.f32.mrf.mxu0
        %870 = vmatprep.mubr.f32.mxu0 0.0
        %871 = vmatmul.mubr.f32.gmra.mxu0 %v799
        %v872 = vpop.f32.mrf.mxu0
        %v873 = vadd.f32 0.0, %v872
        %v874 = vpop.f32.mrf.mxu0
        %875 = vdwg.mxu0
        %v876 = vadd.f32 %v776, %v868
        %v877 = vadd.f32 %v781, %v873
        %v878 = vld [vmem:[%s2] sm:$0x1]
        %v880 = vlaneseq
        %v881 = vshrl.u32 %v880, 7
        %v882 = vsub.s32 0, %v881
        %v883 = vrot.slane %v878, %v882
        %v885 = vadd.f32 %v876, %v883
        %v886 = vadd.f32 %v877, %v883
        %v887 = vmax.f32 %v885, 0.0
        %v888 = vmax.f32 %v886, 0.0
        %v889 = vld [vmem:[%s3] sm:$0x7f]
        %vm890 = vcmask 113664
        %v892 = vsel %vm890, %v889, 0
        %v895 = vsel %vm793, %v888, 0
        %897 = vmatprep.subr.mxu0 0.0
        %898 = vmatpush1.msra.mxu0 0.0
        %899 = vmatprep.subr.mxu0 0.0
        %900 = vmatpush1.msra.mxu0 0.0
        %901 = vmatprep.subr.mxu0 0.0
        %902 = vmatpush1.msra.mxu0 0.0
        %903 = vmatprep.subr.mxu0 0.0
        %904 = vmatpush1.msra.mxu0 0.0
        %905 = vmatprep.subr.mxu0 0.0
        %906 = vmatpush1.msra.mxu0 0.0
        %907 = vmatprep.subr.mxu0 0.0
        %908 = vmatpush1.msra.mxu0 0.0
        %909 = vmatprep.subr.mxu0 0.0
        %910 = vmatpush1.msra.mxu0 0.0
        %911 = vmatprep.subr.mxu0 0.0
        %912 = vmatpush1.msra.mxu0 0.0
        %913 = vmatprep.subr.mxu0 0.0
        %914 = vmatpush1.msra.mxu0 0.0
        %915 = vmatprep.subr.mxu0 0.0
        %916 = vmatpush1.msra.mxu0 0.0
        %917 = vmatprep.subr.mxu0 0.0
        %918 = vmatpush1.msra.mxu0 0.0
        %919 = vmatprep.subr.mxu0 0.0
        %920 = vmatpush1.msra.mxu0 0.0
        %921 = vmatprep.subr.mxu0 0.0
        %922 = vmatpush1.msra.mxu0 0.0
        %923 = vmatprep.subr.mxu0 0.0
        %924 = vmatpush1.msra.mxu0 0.0
        %925 = vmatprep.subr.mxu0 0.0
        %926 = vmatpush1.msra.mxu0 %v895
        %927 = vmatprep.subr.mxu0 0.0
        %928 = vmatpush1.msra.mxu0 %v887
        %929 = vmatprep.subr.mxu0 0.0
        %930 = vmatpush2.msra.mxu0 0.0
        %931 = vmatprep.subr.mxu0 0.0
        %932 = vmatpush2.msra.mxu0 0.0
        %933 = vmatprep.subr.mxu0 0.0
        %934 = vmatpush2.msra.mxu0 0.0
        %935 = vmatprep.subr.mxu0 0.0
        %936 = vmatpush2.msra.mxu0 0.0
        %937 = vmatprep.subr.mxu0 0.0
        %938 = vmatpush2.msra.mxu0 0.0
        %939 = vmatprep.subr.mxu0 0.0
        %940 = vmatpush2.msra.mxu0 0.0
        %941 = vmatprep.subr.mxu0 0.0
        %942 = vmatpush2.msra.mxu0 0.0
        %943 = vmatprep.subr.mxu0 0.0
        %944 = vmatpush2.msra.mxu0 0.0
        %945 = vmatprep.subr.mxu0 0.0
        %946 = vmatpush2.msra.mxu0 0.0
        %947 = vmatprep.subr.mxu0 0.0
        %948 = vmatpush2.msra.mxu0 0.0
        %949 = vmatprep.subr.mxu0 0.0
        %950 = vmatpush2.msra.mxu0 0.0
        %951 = vmatprep.subr.mxu0 0.0
        %952 = vmatpush2.msra.mxu0 0.0
        %953 = vmatprep.subr.mxu0 0.0
        %954 = vmatpush2.msra.mxu0 0.0
        %955 = vmatprep.subr.mxu0 0.0
        %956 = vmatpush2.msra.mxu0 0.0
        %957 = vmatprep.subr.mxu0 0.0
        %958 = vmatpush2.msra.mxu0 0.0
        %959 = vmatprep.subr.mxu0 0.0
        %960 = vmatpush2.msra.mxu0 0.0
        %961 = vmatprep.mubr.f32.mxu0 0.0
        %962 = vmatmul.mubr.f32.gmra.mxu0 %v892
        %v963 = vpop.f32.mrf.mxu0
        %v964 = vadd.f32 0.0, %v963
        %v965 = vpop.f32.mrf.mxu0
        %966 = vdwg.mxu0
        %v967 = vld [vmem:[%s4] sm:$0x7f]
        %v969 = vsel %vm890, %v967, 0
        %971 = vmatprep.subr.mxu0 0.0
        %972 = vmatpush1.msra.mxu0 0.0
        %973 = vmatprep.subr.mxu0 0.0
        %974 = vmatpush1.msra.mxu0 0.0
        %975 = vmatprep.subr.mxu0 0.0
        %976 = vmatpush1.msra.mxu0 0.0
        %977 = vmatprep.subr.mxu0 0.0
        %978 = vmatpush1.msra.mxu0 0.0
        %979 = vmatprep.subr.mxu0 0.0
        %980 = vmatpush1.msra.mxu0 0.0
        %981 = vmatprep.subr.mxu0 0.0
        %982 = vmatpush1.msra.mxu0 0.0
        %983 = vmatprep.subr.mxu0 0.0
        %984 = vmatpush1.msra.mxu0 0.0
        %985 = vmatprep.subr.mxu0 0.0
        %986 = vmatpush1.msra.mxu0 0.0
        %987 = vmatprep.subr.mxu0 0.0
        %988 = vmatpush1.msra.mxu0 0.0
        %989 = vmatprep.subr.mxu0 0.0
        %990 = vmatpush1.msra.mxu0 0.0
        %991 = vmatprep.subr.mxu0 0.0
        %992 = vmatpush1.msra.mxu0 0.0
        %993 = vmatprep.subr.mxu0 0.0
        %994 = vmatpush1.msra.mxu0 0.0
        %995 = vmatprep.subr.mxu0 0.0
        %996 = vmatpush1.msra.mxu0 0.0
        %997 = vmatprep.subr.mxu0 0.0
        %998 = vmatpush1.msra.mxu0 0.0
        %999 = vmatprep.subr.mxu0 0.0
        %1000 = vmatpush1.msra.mxu0 %v895
        %1001 = vmatprep.subr.mxu0 0.0
        %1002 = vmatpush1.msra.mxu0 %v887
        %1003 = vmatprep.subr.mxu0 0.0
        %1004 = vmatpush2.msra.mxu0 0.0
        %1005 = vmatprep.subr.mxu0 0.0
        %1006 = vmatpush2.msra.mxu0 0.0
        %1007 = vmatprep.subr.mxu0 0.0
        %1008 = vmatpush2.msra.mxu0 0.0
        %1009 = vmatprep.subr.mxu0 0.0
        %1010 = vmatpush2.msra.mxu0 0.0
        %1011 = vmatprep.subr.mxu0 0.0
        %1012 = vmatpush2.msra.mxu0 0.0
        %1013 = vmatprep.subr.mxu0 0.0
        %1014 = vmatpush2.msra.mxu0 0.0
        %1015 = vmatprep.subr.mxu0 0.0
        %1016 = vmatpush2.msra.mxu0 0.0
        %1017 = vmatprep.subr.mxu0 0.0
        %1018 = vmatpush2.msra.mxu0 0.0
        %1019 = vmatprep.subr.mxu0 0.0
        %1020 = vmatpush2.msra.mxu0 0.0
        %1021 = vmatprep.subr.mxu0 0.0
        %1022 = vmatpush2.msra.mxu0 0.0
        %1023 = vmatprep.subr.mxu0 0.0
        %1024 = vmatpush2.msra.mxu0 0.0
        %1025 = vmatprep.subr.mxu0 0.0
        %1026 = vmatpush2.msra.mxu0 0.0
        %1027 = vmatprep.subr.mxu0 0.0
        %1028 = vmatpush2.msra.mxu0 0.0
        %1029 = vmatprep.subr.mxu0 0.0
        %1030 = vmatpush2.msra.mxu0 0.0
        %1031 = vmatprep.subr.mxu0 0.0
        %1032 = vmatpush2.msra.mxu0 0.0
        %1033 = vmatprep.subr.mxu0 0.0
        %1034 = vmatpush2.msra.mxu0 0.0
        %1035 = vmatprep.mubr.f32.mxu0 0.0
        %1036 = vmatmul.mubr.f32.gmra.mxu0 %v969
        %v1037 = vpop.f32.mrf.mxu0
        %v1038 = vadd.f32 0.0, %v1037
        %v1039 = vpop.f32.mrf.mxu0
        %1040 = vdwg.mxu0
        %v1041 = vmax.f32 %v964, %v1038
        %v1042 = vld [vmem:[%s5] sm:$0xff]
        %v1043 = vld [vmem:[%s5 + $0x8] sm:$0xff]
        %v1044 = vld [vmem:[%s5 + $0x10] sm:$0xff]
        %v1045 = vld [vmem:[%s5 + $0x18] sm:$0xff]
        %v1046 = vld [vmem:[%s5 + $0x20] sm:$0xff]
        %v1047 = vld [vmem:[%s5 + $0x28] sm:$0xff]
        %v1048 = vld [vmem:[%s5 + $0x30] sm:$0xff]
        %v1049 = vld [vmem:[%s5 + $0x38] sm:$0xff]
        %v1050 = vld [vmem:[%s5 + $0x40] sm:$0xff]
        %v1051 = vld [vmem:[%s5 + $0x48] sm:$0xff]
        %v1052 = vld [vmem:[%s5 + $0x50] sm:$0xff]
        %v1053 = vld [vmem:[%s5 + $0x58] sm:$0xff]
        %v1054 = vld [vmem:[%s5 + $0x60] sm:$0xff]
        %v1055 = vld [vmem:[%s5 + $0x68] sm:$0xff]
        %vm1056 = vcmask 916480
        %v1058 = vsel %vm1056, %v1041, 0
        %1060 = vmatprep.subr.mxu0 0.0
        %1061 = vmatpush1.msra.mxu0 0.0
        %1062 = vmatprep.subr.mxu0 0.0
        %1063 = vmatpush1.msra.mxu0 0.0
        %1064 = vmatprep.subr.mxu0 0.0
        %1065 = vmatpush1.msra.mxu0 %v1055
        %1066 = vmatprep.subr.mxu0 0.0
        %1067 = vmatpush1.msra.mxu0 %v1054
        %1068 = vmatprep.subr.mxu0 0.0
        %1069 = vmatpush1.msra.mxu0 %v1053
        %1070 = vmatprep.subr.mxu0 0.0
        %1071 = vmatpush1.msra.mxu0 %v1052
        %1072 = vmatprep.subr.mxu0 0.0
        %1073 = vmatpush1.msra.mxu0 %v1051
        %1074 = vmatprep.subr.mxu0 0.0
        %1075 = vmatpush1.msra.mxu0 %v1050
        %1076 = vmatprep.subr.mxu0 0.0
        %1077 = vmatpush1.msra.mxu0 %v1049
        %1078 = vmatprep.subr.mxu0 0.0
        %1079 = vmatpush1.msra.mxu0 %v1048
        %1080 = vmatprep.subr.mxu0 0.0
        %1081 = vmatpush1.msra.mxu0 %v1047
        %1082 = vmatprep.subr.mxu0 0.0
        %1083 = vmatpush1.msra.mxu0 %v1046
        %1084 = vmatprep.subr.mxu0 0.0
        %1085 = vmatpush1.msra.mxu0 %v1045
        %1086 = vmatprep.subr.mxu0 0.0
        %1087 = vmatpush1.msra.mxu0 %v1044
        %1088 = vmatprep.subr.mxu0 0.0
        %1089 = vmatpush1.msra.mxu0 %v1043
        %1090 = vmatprep.subr.mxu0 0.0
        %1091 = vmatpush1.msra.mxu0 %v1042
        %1092 = vmatprep.subr.mxu0 0.0
        %1093 = vmatpush2.msra.mxu0 0.0
        %1094 = vmatprep.subr.mxu0 0.0
        %1095 = vmatpush2.msra.mxu0 0.0
        %1096 = vmatprep.subr.mxu0 0.0
        %1097 = vmatpush2.msra.mxu0 0.0
        %1098 = vmatprep.subr.mxu0 0.0
        %1099 = vmatpush2.msra.mxu0 0.0
        %1100 = vmatprep.subr.mxu0 0.0
        %1101 = vmatpush2.msra.mxu0 0.0
        %1102 = vmatprep.subr.mxu0 0.0
        %1103 = vmatpush2.msra.mxu0 0.0
        %1104 = vmatprep.subr.mxu0 0.0
        %1105 = vmatpush2.msra.mxu0 0.0
        %1106 = vmatprep.subr.mxu0 0.0
        %1107 = vmatpush2.msra.mxu0 0.0
        %1108 = vmatprep.subr.mxu0 0.0
        %1109 = vmatpush2.msra.mxu0 0.0
        %1110 = vmatprep.subr.mxu0 0.0
        %1111 = vmatpush2.msra.mxu0 0.0
        %1112 = vmatprep.subr.mxu0 0.0
        %1113 = vmatpush2.msra.mxu0 0.0
        %1114 = vmatprep.subr.mxu0 0.0
        %1115 = vmatpush2.msra.mxu0 0.0
        %1116 = vmatprep.subr.mxu0 0.0
        %1117 = vmatpush2.msra.mxu0 0.0
        %1118 = vmatprep.subr.mxu0 0.0
        %1119 = vmatpush2.msra.mxu0 0.0
        %1120 = vmatprep.subr.mxu0 0.0
        %1121 = vmatpush2.msra.mxu0 0.0
        %1122 = vmatprep.subr.mxu0 0.0
        %1123 = vmatpush2.msra.mxu0 0.0
        %1124 = vmatprep.mubr.f32.mxu0 0.0
        %1125 = vmatmul.mubr.f32.gmra.mxu0 %v1058
        %v1126 = vpop.f32.mrf.mxu0
        %v1127 = vadd.f32 0.0, %v1126
        %v1128 = vpop.f32.mrf.mxu0
        %1129 = vdwg.mxu0
        %v1130 = vld [vmem:[%s6] sm:$0xff]
        %v1131 = vld [vmem:[%s6 + $0x8] sm:$0xff]
        %v1132 = vld [vmem:[%s6 + $0x10] sm:$0xff]
        %v1133 = vld [vmem:[%s6 + $0x18] sm:$0xff]
        %v1134 = vld [vmem:[%s6 + $0x20] sm:$0xff]
        %v1135 = vld [vmem:[%s6 + $0x28] sm:$0xff]
        %v1136 = vld [vmem:[%s6 + $0x30] sm:$0xff]
        %v1137 = vld [vmem:[%s6 + $0x38] sm:$0xff]
        %v1138 = vld [vmem:[%s6 + $0x40] sm:$0xff]
        %v1139 = vld [vmem:[%s6 + $0x48] sm:$0xff]
        %v1140 = vld [vmem:[%s6 + $0x50] sm:$0xff]
        %v1141 = vld [vmem:[%s6 + $0x58] sm:$0xff]
        %v1142 = vld [vmem:[%s6 + $0x60] sm:$0xff]
        %v1143 = vld [vmem:[%s6 + $0x68] sm:$0xff]
        %1144 = vmatprep.subr.mxu0 0.0
        %1145 = vmatpush1.msra.mxu0 0.0
        %1146 = vmatprep.subr.mxu0 0.0
        %1147 = vmatpush1.msra.mxu0 0.0
        %1148 = vmatprep.subr.mxu0 0.0
        %1149 = vmatpush1.msra.mxu0 %v1143
        %1150 = vmatprep.subr.mxu0 0.0
        %1151 = vmatpush1.msra.mxu0 %v1142
        %1152 = vmatprep.subr.mxu0 0.0
        %1153 = vmatpush1.msra.mxu0 %v1141
        %1154 = vmatprep.subr.mxu0 0.0
        %1155 = vmatpush1.msra.mxu0 %v1140
        %1156 = vmatprep.subr.mxu0 0.0
        %1157 = vmatpush1.msra.mxu0 %v1139
        %1158 = vmatprep.subr.mxu0 0.0
        %1159 = vmatpush1.msra.mxu0 %v1138
        %1160 = vmatprep.subr.mxu0 0.0
        %1161 = vmatpush1.msra.mxu0 %v1137
        %1162 = vmatprep.subr.mxu0 0.0
        %1163 = vmatpush1.msra.mxu0 %v1136
        %1164 = vmatprep.subr.mxu0 0.0
        %1165 = vmatpush1.msra.mxu0 %v1135
        %1166 = vmatprep.subr.mxu0 0.0
        %1167 = vmatpush1.msra.mxu0 %v1134
        %1168 = vmatprep.subr.mxu0 0.0
        %1169 = vmatpush1.msra.mxu0 %v1133
        %1170 = vmatprep.subr.mxu0 0.0
        %1171 = vmatpush1.msra.mxu0 %v1132
        %1172 = vmatprep.subr.mxu0 0.0
        %1173 = vmatpush1.msra.mxu0 %v1131
        %1174 = vmatprep.subr.mxu0 0.0
        %1175 = vmatpush1.msra.mxu0 %v1130
        %1176 = vmatprep.subr.mxu0 0.0
        %1177 = vmatpush2.msra.mxu0 0.0
        %1178 = vmatprep.subr.mxu0 0.0
        %1179 = vmatpush2.msra.mxu0 0.0
        %1180 = vmatprep.subr.mxu0 0.0
        %1181 = vmatpush2.msra.mxu0 0.0
        %1182 = vmatprep.subr.mxu0 0.0
        %1183 = vmatpush2.msra.mxu0 0.0
        %1184 = vmatprep.subr.mxu0 0.0
        %1185 = vmatpush2.msra.mxu0 0.0
        %1186 = vmatprep.subr.mxu0 0.0
        %1187 = vmatpush2.msra.mxu0 0.0
        %1188 = vmatprep.subr.mxu0 0.0
        %1189 = vmatpush2.msra.mxu0 0.0
        %1190 = vmatprep.subr.mxu0 0.0
        %1191 = vmatpush2.msra.mxu0 0.0
        %1192 = vmatprep.subr.mxu0 0.0
        %1193 = vmatpush2.msra.mxu0 0.0
        %1194 = vmatprep.subr.mxu0 0.0
        %1195 = vmatpush2.msra.mxu0 0.0
        %1196 = vmatprep.subr.mxu0 0.0
        %1197 = vmatpush2.msra.mxu0 0.0
        %1198 = vmatprep.subr.mxu0 0.0
        %1199 = vmatpush2.msra.mxu0 0.0
        %1200 = vmatprep.subr.mxu0 0.0
        %1201 = vmatpush2.msra.mxu0 0.0
        %1202 = vmatprep.subr.mxu0 0.0
        %1203 = vmatpush2.msra.mxu0 0.0
        %1204 = vmatprep.subr.mxu0 0.0
        %1205 = vmatpush2.msra.mxu0 0.0
        %1206 = vmatprep.subr.mxu0 0.0
        %1207 = vmatpush2.msra.mxu0 0.0
        %1208 = vmatprep.mubr.f32.mxu0 0.0
        %1209 = vmatmul.mubr.f32.gmra.mxu0 %v1058
        %v1210 = vpop.f32.mrf.mxu0
        %v1211 = vadd.f32 0.0, %v1210
        %v1212 = vpop.f32.mrf.mxu0
        %1213 = vdwg.mxu0
        %v1214 = vmax.f32 %v1127, %v1211
        %v1215 = vld [vmem:[%s7] sm:$0xff]
        %v1216 = vld [vmem:[%s7 + $0x8] sm:$0xff]
        %v1217 = vld [vmem:[%s7 + $0x10] sm:$0xff]
        %v1218 = vld [vmem:[%s7 + $0x18] sm:$0xff]
        %v1219 = vld [vmem:[%s7 + $0x20] sm:$0xff]
        %v1220 = vld [vmem:[%s7 + $0x28] sm:$0xff]
        %v1221 = vld [vmem:[%s7 + $0x30] sm:$0xff]
        %s1222 = scalar_lea.vmem %s7, 56
        %v1223 = vld [vmem:[%s1222] sm:$0xff]
        %v1224 = vld [vmem:[%s1222 + $0x8] sm:$0xff]
        %v1225 = vld [vmem:[%s1222 + $0x10] sm:$0xff]
        %v1226 = vld [vmem:[%s1222 + $0x18] sm:$0xff]
        %v1227 = vld [vmem:[%s1222 + $0x20] sm:$0xff]
        %v1228 = vld [vmem:[%s1222 + $0x28] sm:$0xff]
        %v1229 = vld [vmem:[%s1222 + $0x30] sm:$0xff]
        %v1231 = vrot.slane %v1214, 1
        %vm1232 = vcmask 457728
        %v1233 = vsel %vm1232, %v1231, 0
        %1235 = vmatprep.subr.mxu0 0.0
        %1236 = vmatpush1.msra.mxu0 0.0
        %1237 = vmatprep.subr.mxu0 0.0
        %1238 = vmatpush1.msra.mxu0 0.0
        %1239 = vmatprep.subr.mxu0 0.0
        %1240 = vmatpush1.msra.mxu0 0.0
        %1241 = vmatprep.subr.mxu0 0.0
        %1242 = vmatpush1.msra.mxu0 0.0
        %1243 = vmatprep.subr.mxu0 0.0
        %1244 = vmatpush1.msra.mxu0 0.0
        %1245 = vmatprep.subr.mxu0 0.0
        %1246 = vmatpush1.msra.mxu0 0.0
        %1247 = vmatprep.subr.mxu0 0.0
        %1248 = vmatpush1.msra.mxu0 0.0
        %1249 = vmatprep.subr.mxu0 0.0
        %1250 = vmatpush1.msra.mxu0 0.0
        %1251 = vmatprep.subr.mxu0 0.0
        %1252 = vmatpush1.msra.mxu0 0.0
        %1253 = vmatprep.subr.mxu0 0.0
        %1254 = vmatpush1.msra.mxu0 %v1229
        %1255 = vmatprep.subr.mxu0 0.0
        %1256 = vmatpush1.msra.mxu0 %v1228
        %1257 = vmatprep.subr.mxu0 0.0
        %1258 = vmatpush1.msra.mxu0 %v1227
        %1259 = vmatprep.subr.mxu0 0.0
        %1260 = vmatpush1.msra.mxu0 %v1226
        %1261 = vmatprep.subr.mxu0 0.0
        %1262 = vmatpush1.msra.mxu0 %v1225
        %1263 = vmatprep.subr.mxu0 0.0
        %1264 = vmatpush1.msra.mxu0 %v1224
        %1265 = vmatprep.subr.mxu0 0.0
        %1266 = vmatpush1.msra.mxu0 %v1223
        %1267 = vmatprep.subr.mxu0 0.0
        %1268 = vmatpush2.msra.mxu0 0.0
        %1269 = vmatprep.subr.mxu0 0.0
        %1270 = vmatpush2.msra.mxu0 0.0
        %1271 = vmatprep.subr.mxu0 0.0
        %1272 = vmatpush2.msra.mxu0 0.0
        %1273 = vmatprep.subr.mxu0 0.0
        %1274 = vmatpush2.msra.mxu0 0.0
        %1275 = vmatprep.subr.mxu0 0.0
        %1276 = vmatpush2.msra.mxu0 0.0
        %1277 = vmatprep.subr.mxu0 0.0
        %1278 = vmatpush2.msra.mxu0 0.0
        %1279 = vmatprep.subr.mxu0 0.0
        %1280 = vmatpush2.msra.mxu0 0.0
        %1281 = vmatprep.subr.mxu0 0.0
        %1282 = vmatpush2.msra.mxu0 0.0
        %1283 = vmatprep.subr.mxu0 0.0
        %1284 = vmatpush2.msra.mxu0 0.0
        %1285 = vmatprep.subr.mxu0 0.0
        %1286 = vmatpush2.msra.mxu0 0.0
        %1287 = vmatprep.subr.mxu0 0.0
        %1288 = vmatpush2.msra.mxu0 0.0
        %1289 = vmatprep.subr.mxu0 0.0
        %1290 = vmatpush2.msra.mxu0 0.0
        %1291 = vmatprep.subr.mxu0 0.0
        %1292 = vmatpush2.msra.mxu0 0.0
        %1293 = vmatprep.subr.mxu0 0.0
        %1294 = vmatpush2.msra.mxu0 0.0
        %1295 = vmatprep.subr.mxu0 0.0
        %1296 = vmatpush2.msra.mxu0 0.0
        %1297 = vmatprep.subr.mxu0 0.0
        %1298 = vmatpush2.msra.mxu0 0.0
        %1299 = vmatprep.mubr.f32.mxu0 0.0
        %1300 = vmatmul.mubr.f32.gmra.mxu0 %v1233
        %v1301 = vpop.f32.mrf.mxu0
        %v1302 = vadd.f32 0.0, %v1301
        %v1303 = vpop.f32.mrf.mxu0
        %1304 = vdwg.mxu0
        %v1305 = vsel %vm1232, %v1214, 0
        %1307 = vmatprep.subr.mxu0 0.0
        %1308 = vmatpush1.msra.mxu0 0.0
        %1309 = vmatprep.subr.mxu0 0.0
        %1310 = vmatpush1.msra.mxu0 0.0
        %1311 = vmatprep.subr.mxu0 0.0
        %1312 = vmatpush1.msra.mxu0 0.0
        %1313 = vmatprep.subr.mxu0 0.0
        %1314 = vmatpush1.msra.mxu0 0.0
        %1315 = vmatprep.subr.mxu0 0.0
        %1316 = vmatpush1.msra.mxu0 0.0
        %1317 = vmatprep.subr.mxu0 0.0
        %1318 = vmatpush1.msra.mxu0 0.0
        %1319 = vmatprep.subr.mxu0 0.0
        %1320 = vmatpush1.msra.mxu0 0.0
        %1321 = vmatprep.subr.mxu0 0.0
        %1322 = vmatpush1.msra.mxu0 0.0
        %1323 = vmatprep.subr.mxu0 0.0
        %1324 = vmatpush1.msra.mxu0 0.0
        %1325 = vmatprep.subr.mxu0 0.0
        %1326 = vmatpush1.msra.mxu0 %v1221
        %1327 = vmatprep.subr.mxu0 0.0
        %1328 = vmatpush1.msra.mxu0 %v1220
        %1329 = vmatprep.subr.mxu0 0.0
        %1330 = vmatpush1.msra.mxu0 %v1219
        %1331 = vmatprep.subr.mxu0 0.0
        %1332 = vmatpush1.msra.mxu0 %v1218
        %1333 = vmatprep.subr.mxu0 0.0
        %1334 = vmatpush1.msra.mxu0 %v1217
        %1335 = vmatprep.subr.mxu0 0.0
        %1336 = vmatpush1.msra.mxu0 %v1216
        %1337 = vmatprep.subr.mxu0 0.0
        %1338 = vmatpush1.msra.mxu0 %v1215
        %1339 = vmatprep.subr.mxu0 0.0
        %1340 = vmatpush2.msra.mxu0 0.0
        %1341 = vmatprep.subr.mxu0 0.0
        %1342 = vmatpush2.msra.mxu0 0.0
        %1343 = vmatprep.subr.mxu0 0.0
        %1344 = vmatpush2.msra.mxu0 0.0
        %1345 = vmatprep.subr.mxu0 0.0
        %1346 = vmatpush2.msra.mxu0 0.0
        %1347 = vmatprep.subr.mxu0 0.0
        %1348 = vmatpush2.msra.mxu0 0.0
        %1349 = vmatprep.subr.mxu0 0.0
        %1350 = vmatpush2.msra.mxu0 0.0
        %1351 = vmatprep.subr.mxu0 0.0
        %1352 = vmatpush2.msra.mxu0 0.0
        %1353 = vmatprep.subr.mxu0 0.0
        %1354 = vmatpush2.msra.mxu0 0.0
        %1355 = vmatprep.subr.mxu0 0.0
        %1356 = vmatpush2.msra.mxu0 0.0
        %1357 = vmatprep.subr.mxu0 0.0
        %1358 = vmatpush2.msra.mxu0 0.0
        %1359 = vmatprep.subr.mxu0 0.0
        %1360 = vmatpush2.msra.mxu0 0.0
        %1361 = vmatprep.subr.mxu0 0.0
        %1362 = vmatpush2.msra.mxu0 0.0
        %1363 = vmatprep.subr.mxu0 0.0
        %1364 = vmatpush2.msra.mxu0 0.0
        %1365 = vmatprep.subr.mxu0 0.0
        %1366 = vmatpush2.msra.mxu0 0.0
        %1367 = vmatprep.subr.mxu0 0.0
        %1368 = vmatpush2.msra.mxu0 0.0
        %1369 = vmatprep.subr.mxu0 0.0
        %1370 = vmatpush2.msra.mxu0 0.0
        %1371 = vmatprep.mubr.f32.mxu0 0.0
        %1372 = vmatmul.mubr.f32.gmra.mxu0 %v1305
        %v1373 = vpop.f32.mrf.mxu0
        %v1374 = vadd.f32 %v1302, %v1373
        %v1375 = vpop.f32.mrf.mxu0
        %1376 = vdwg.mxu0
        %s1377 = scalar_lea.vmem %s7, 112
        %v1378 = vld [vmem:[%s1377] sm:$0xff]
        %v1379 = vld [vmem:[%s1377 + $0x8] sm:$0xff]
        %v1380 = vld [vmem:[%s1377 + $0x10] sm:$0xff]
        %v1381 = vld [vmem:[%s1377 + $0x18] sm:$0xff]
        %v1382 = vld [vmem:[%s1377 + $0x20] sm:$0xff]
        %v1383 = vld [vmem:[%s1377 + $0x28] sm:$0xff]
        %v1384 = vld [vmem:[%s1377 + $0x30] sm:$0xff]
        %v1385 = vrot.slane %v1214, 2
        %v1386 = vsel %vm1232, %v1385, 0
        %1388 = vmatprep.subr.mxu0 0.0
        %1389 = vmatpush1.msra.mxu0 0.0
        %1390 = vmatprep.subr.mxu0 0.0
        %1391 = vmatpush1.msra.mxu0 0.0
        %1392 = vmatprep.subr.mxu0 0.0
        %1393 = vmatpush1.msra.mxu0 0.0
        %1394 = vmatprep.subr.mxu0 0.0
        %1395 = vmatpush1.msra.mxu0 0.0
        %1396 = vmatprep.subr.mxu0 0.0
        %1397 = vmatpush1.msra.mxu0 0.0
        %1398 = vmatprep.subr.mxu0 0.0
        %1399 = vmatpush1.msra.mxu0 0.0
        %1400 = vmatprep.subr.mxu0 0.0
        %1401 = vmatpush1.msra.mxu0 0.0
        %1402 = vmatprep.subr.mxu0 0.0
        %1403 = vmatpush1.msra.mxu0 0.0
        %1404 = vmatprep.subr.mxu0 0.0
        %1405 = vmatpush1.msra.mxu0 0.0
        %1406 = vmatprep.subr.mxu0 0.0
        %1407 = vmatpush1.msra.mxu0 %v1384
        %1408 = vmatprep.subr.mxu0 0.0
        %1409 = vmatpush1.msra.mxu0 %v1383
        %1410 = vmatprep.subr.mxu0 0.0
        %1411 = vmatpush1.msra.mxu0 %v1382
        %1412 = vmatprep.subr.mxu0 0.0
        %1413 = vmatpush1.msra.mxu0 %v1381
        %1414 = vmatprep.subr.mxu0 0.0
        %1415 = vmatpush1.msra.mxu0 %v1380
        %1416 = vmatprep.subr.mxu0 0.0
        %1417 = vmatpush1.msra.mxu0 %v1379
        %1418 = vmatprep.subr.mxu0 0.0
        %1419 = vmatpush1.msra.mxu0 %v1378
        %1420 = vmatprep.subr.mxu0 0.0
        %1421 = vmatpush2.msra.mxu0 0.0
        %1422 = vmatprep.subr.mxu0 0.0
        %1423 = vmatpush2.msra.mxu0 0.0
        %1424 = vmatprep.subr.mxu0 0.0
        %1425 = vmatpush2.msra.mxu0 0.0
        %1426 = vmatprep.subr.mxu0 0.0
        %1427 = vmatpush2.msra.mxu0 0.0
        %1428 = vmatprep.subr.mxu0 0.0
        %1429 = vmatpush2.msra.mxu0 0.0
        %1430 = vmatprep.subr.mxu0 0.0
        %1431 = vmatpush2.msra.mxu0 0.0
        %1432 = vmatprep.subr.mxu0 0.0
        %1433 = vmatpush2.msra.mxu0 0.0
        %1434 = vmatprep.subr.mxu0 0.0
        %1435 = vmatpush2.msra.mxu0 0.0
        %1436 = vmatprep.subr.mxu0 0.0
        %1437 = vmatpush2.msra.mxu0 0.0
        %1438 = vmatprep.subr.mxu0 0.0
        %1439 = vmatpush2.msra.mxu0 0.0
        %1440 = vmatprep.subr.mxu0 0.0
        %1441 = vmatpush2.msra.mxu0 0.0
        %1442 = vmatprep.subr.mxu0 0.0
        %1443 = vmatpush2.msra.mxu0 0.0
        %1444 = vmatprep.subr.mxu0 0.0
        %1445 = vmatpush2.msra.mxu0 0.0
        %1446 = vmatprep.subr.mxu0 0.0
        %1447 = vmatpush2.msra.mxu0 0.0
        %1448 = vmatprep.subr.mxu0 0.0
        %1449 = vmatpush2.msra.mxu0 0.0
        %1450 = vmatprep.subr.mxu0 0.0
        %1451 = vmatpush2.msra.mxu0 0.0
        %1452 = vmatprep.mubr.f32.mxu0 0.0
        %1453 = vmatmul.mubr.f32.gmra.mxu0 %v1386
        %v1454 = vpop.f32.mrf.mxu0
        %v1455 = vadd.f32 0.0, %v1454
        %v1456 = vpop.f32.mrf.mxu0
        %1457 = vdwg.mxu0
        %v1458 = vadd.f32 %v1374, %v1455
        %v1459 = vld [vmem:[%s8] sm:$0x1]
        %v1461 = vlaneseq
        %v1462 = vshrl.u32 %v1461, 7
        %v1463 = vsub.s32 0, %v1462
        %v1464 = vrot.slane %v1459, %v1463
        %v1466 = vadd.f32 %v1458, %v1464
        %v1467 = vmax.f32 %v1466, 0.0
        %v1468 = vld [vmem:[%s9] sm:$0x3]
        %vm1469 = vcmask 39936
        %v1471 = vsel %vm1469, %v1468, 0
        %vm1473 = vcmask 1044480
        %v1475 = vsel %vm1473, %v1467, 0
        %1477 = vmatprep.subr.mxu0 0.0
        %1478 = vmatpush1.msra.mxu0 0.0
        %1479 = vmatprep.subr.mxu0 0.0
        %1480 = vmatpush1.msra.mxu0 0.0
        %1481 = vmatprep.subr.mxu0 0.0
        %1482 = vmatpush1.msra.mxu0 0.0
        %1483 = vmatprep.subr.mxu0 0.0
        %1484 = vmatpush1.msra.mxu0 0.0
        %1485 = vmatprep.subr.mxu0 0.0
        %1486 = vmatpush1.msra.mxu0 0.0
        %1487 = vmatprep.subr.mxu0 0.0
        %1488 = vmatpush1.msra.mxu0 0.0
        %1489 = vmatprep.subr.mxu0 0.0
        %1490 = vmatpush1.msra.mxu0 0.0
        %1491 = vmatprep.subr.mxu0 0.0
        %1492 = vmatpush1.msra.mxu0 0.0
        %1493 = vmatprep.subr.mxu0 0.0
        %1494 = vmatpush1.msra.mxu0 0.0
        %1495 = vmatprep.subr.mxu0 0.0
        %1496 = vmatpush1.msra.mxu0 0.0
        %1497 = vmatprep.subr.mxu0 0.0
        %1498 = vmatpush1.msra.mxu0 0.0
        %1499 = vmatprep.subr.mxu0 0.0
        %1500 = vmatpush1.msra.mxu0 0.0
        %1501 = vmatprep.subr.mxu0 0.0
        %1502 = vmatpush1.msra.mxu0 0.0
        %1503 = vmatprep.subr.mxu0 0.0
        %1504 = vmatpush1.msra.mxu0 0.0
        %1505 = vmatprep.subr.mxu0 0.0
        %1506 = vmatpush1.msra.mxu0 0.0
        %1507 = vmatprep.subr.mxu0 0.0
        %1508 = vmatpush1.msra.mxu0 %v1475
        %1509 = vmatprep.subr.mxu0 0.0
        %1510 = vmatpush2.msra.mxu0 0.0
        %1511 = vmatprep.subr.mxu0 0.0
        %1512 = vmatpush2.msra.mxu0 0.0
        %1513 = vmatprep.subr.mxu0 0.0
        %1514 = vmatpush2.msra.mxu0 0.0
        %1515 = vmatprep.subr.mxu0 0.0
        %1516 = vmatpush2.msra.mxu0 0.0
        %1517 = vmatprep.subr.mxu0 0.0
        %1518 = vmatpush2.msra.mxu0 0.0
        %1519 = vmatprep.subr.mxu0 0.0
        %1520 = vmatpush2.msra.mxu0 0.0
        %1521 = vmatprep.subr.mxu0 0.0
        %1522 = vmatpush2.msra.mxu0 0.0
        %1523 = vmatprep.subr.mxu0 0.0
        %1524 = vmatpush2.msra.mxu0 0.0
        %1525 = vmatprep.subr.mxu0 0.0
        %1526 = vmatpush2.msra.mxu0 0.0
        %1527 = vmatprep.subr.mxu0 0.0
        %1528 = vmatpush2.msra.mxu0 0.0
        %1529 = vmatprep.subr.mxu0 0.0
        %1530 = vmatpush2.msra.mxu0 0.0
        %1531 = vmatprep.subr.mxu0 0.0
        %1532 = vmatpush2.msra.mxu0 0.0
        %1533 = vmatprep.subr.mxu0 0.0
        %1534 = vmatpush2.msra.mxu0 0.0
        %1535 = vmatprep.subr.mxu0 0.0
        %1536 = vmatpush2.msra.mxu0 0.0
        %1537 = vmatprep.subr.mxu0 0.0
        %1538 = vmatpush2.msra.mxu0 0.0
        %1539 = vmatprep.subr.mxu0 0.0
        %1540 = vmatpush2.msra.mxu0 0.0
        %1541 = vmatprep.mubr.f32.mxu0 0.0
        %1542 = vmatmul.mubr.f32.gmra.mxu0 %v1471
        %v1543 = vpop.f32.mrf.mxu0
        %v1544 = vadd.f32 0.0, %v1543
        %v1545 = vpop.f32.mrf.mxu0
        %1546 = vdwg.mxu0
        %v1547 = vld [vmem:[%s10] sm:$0x3]
        %v1549 = vsel %vm1469, %v1547, 0
        %1551 = vmatprep.subr.mxu0 0.0
        %1552 = vmatpush1.msra.mxu0 0.0
        %1553 = vmatprep.subr.mxu0 0.0
        %1554 = vmatpush1.msra.mxu0 0.0
        %1555 = vmatprep.subr.mxu0 0.0
        %1556 = vmatpush1.msra.mxu0 0.0
        %1557 = vmatprep.subr.mxu0 0.0
        %1558 = vmatpush1.msra.mxu0 0.0
        %1559 = vmatprep.subr.mxu0 0.0
        %1560 = vmatpush1.msra.mxu0 0.0
        %1561 = vmatprep.subr.mxu0 0.0
        %1562 = vmatpush1.msra.mxu0 0.0
        %1563 = vmatprep.subr.mxu0 0.0
        %1564 = vmatpush1.msra.mxu0 0.0
        %1565 = vmatprep.subr.mxu0 0.0
        %1566 = vmatpush1.msra.mxu0 0.0
        %1567 = vmatprep.subr.mxu0 0.0
        %1568 = vmatpush1.msra.mxu0 0.0
        %1569 = vmatprep.subr.mxu0 0.0
        %1570 = vmatpush1.msra.mxu0 0.0
        %1571 = vmatprep.subr.mxu0 0.0
        %1572 = vmatpush1.msra.mxu0 0.0
        %1573 = vmatprep.subr.mxu0 0.0
        %1574 = vmatpush1.msra.mxu0 0.0
        %1575 = vmatprep.subr.mxu0 0.0
        %1576 = vmatpush1.msra.mxu0 0.0
        %1577 = vmatprep.subr.mxu0 0.0
        %1578 = vmatpush1.msra.mxu0 0.0
        %1579 = vmatprep.subr.mxu0 0.0
        %1580 = vmatpush1.msra.mxu0 0.0
        %1581 = vmatprep.subr.mxu0 0.0
        %1582 = vmatpush1.msra.mxu0 %v1475
        %1583 = vmatprep.subr.mxu0 0.0
        %1584 = vmatpush2.msra.mxu0 0.0
        %1585 = vmatprep.subr.mxu0 0.0
        %1586 = vmatpush2.msra.mxu0 0.0
        %1587 = vmatprep.subr.mxu0 0.0
        %1588 = vmatpush2.msra.mxu0 0.0
        %1589 = vmatprep.subr.mxu0 0.0
        %1590 = vmatpush2.msra.mxu0 0.0
        %1591 = vmatprep.subr.mxu0 0.0
        %1592 = vmatpush2.msra.mxu0 0.0
        %1593 = vmatprep.subr.mxu0 0.0
        %1594 = vmatpush2.msra.mxu0 0.0
        %1595 = vmatprep.subr.mxu0 0.0
        %1596 = vmatpush2.msra.mxu0 0.0
        %1597 = vmatprep.subr.mxu0 0.0
        %1598 = vmatpush2.msra.mxu0 0.0
        %1599 = vmatprep.subr.mxu0 0.0
        %1600 = vmatpush2.msra.mxu0 0.0
        %1601 = vmatprep.subr.mxu0 0.0
        %1602 = vmatpush2.msra.mxu0 0.0
        %1603 = vmatprep.subr.mxu0 0.0
        %1604 = vmatpush2.msra.mxu0 0.0
        %1605 = vmatprep.subr.mxu0 0.0
        %1606 = vmatpush2.msra.mxu0 0.0
        %1607 = vmatprep.subr.mxu0 0.0
        %1608 = vmatpush2.msra.mxu0 0.0
        %1609 = vmatprep.subr.mxu0 0.0
        %1610 = vmatpush2.msra.mxu0 0.0
        %1611 = vmatprep.subr.mxu0 0.0
        %1612 = vmatpush2.msra.mxu0 0.0
        %1613 = vmatprep.subr.mxu0 0.0
        %1614 = vmatpush2.msra.mxu0 0.0
        %1615 = vmatprep.mubr.f32.mxu0 0.0
        %1616 = vmatmul.mubr.f32.gmra.mxu0 %v1549
        %v1617 = vpop.f32.mrf.mxu0
        %v1618 = vadd.f32 0.0, %v1617
        %v1619 = vpop.f32.mrf.mxu0
        %1620 = vdwg.mxu0
        %v1621 = vmax.f32 %v1544, %v1618
        %v1622 = vld [vmem:[%s11] sm:$0xff]
        %v1623 = vld [vmem:[%s11 + $0x8] sm:$0xff]
        %v1624 = vld [vmem:[%s11 + $0x10] sm:$0xff]
        %v1625 = vld [vmem:[%s11 + $0x18] sm:$0xff]
        %v1626 = vld [vmem:[%s11 + $0x20] sm:$0xff]
        %v1627 = vld [vmem:[%s11 + $0x28] sm:$0xff]
        %v1628 = vld [vmem:[%s11 + $0x30] sm:$0xff]
        %v1629 = vld [vmem:[%s11 + $0x38] sm:$0xff]
        %v1630 = vld [vmem:[%s11 + $0x40] sm:$0xff]
        %v1631 = vld [vmem:[%s11 + $0x48] sm:$0xff]
        %vm1632 = vcmask 654336
        %v1634 = vsel %vm1632, %v1621, 0
        %1636 = vmatprep.subr.mxu0 0.0
        %1637 = vmatpush1.msra.mxu0 0.0
        %1638 = vmatprep.subr.mxu0 0.0
        %1639 = vmatpush1.msra.mxu0 0.0
        %1640 = vmatprep.subr.mxu0 0.0
        %1641 = vmatpush1.msra.mxu0 0.0
        %1642 = vmatprep.subr.mxu0 0.0
        %1643 = vmatpush1.msra.mxu0 0.0
        %1644 = vmatprep.subr.mxu0 0.0
        %1645 = vmatpush1.msra.mxu0 0.0
        %1646 = vmatprep.subr.mxu0 0.0
        %1647 = vmatpush1.msra.mxu0 0.0
        %1648 = vmatprep.subr.mxu0 0.0
        %1649 = vmatpush1.msra.mxu0 %v1631
        %1650 = vmatprep.subr.mxu0 0.0
        %1651 = vmatpush1.msra.mxu0 %v1630
        %1652 = vmatprep.subr.mxu0 0.0
        %1653 = vmatpush1.msra.mxu0 %v1629
        %1654 = vmatprep.subr.mxu0 0.0
        %1655 = vmatpush1.msra.mxu0 %v1628
        %1656 = vmatprep.subr.mxu0 0.0
        %1657 = vmatpush1.msra.mxu0 %v1627
        %1658 = vmatprep.subr.mxu0 0.0
        %1659 = vmatpush1.msra.mxu0 %v1626
        %1660 = vmatprep.subr.mxu0 0.0
        %1661 = vmatpush1.msra.mxu0 %v1625
        %1662 = vmatprep.subr.mxu0 0.0
        %1663 = vmatpush1.msra.mxu0 %v1624
        %1664 = vmatprep.subr.mxu0 0.0
        %1665 = vmatpush1.msra.mxu0 %v1623
        %1666 = vmatprep.subr.mxu0 0.0
        %1667 = vmatpush1.msra.mxu0 %v1622
        %1668 = vmatprep.subr.mxu0 0.0
        %1669 = vmatpush2.msra.mxu0 0.0
        %1670 = vmatprep.subr.mxu0 0.0
        %1671 = vmatpush2.msra.mxu0 0.0
        %1672 = vmatprep.subr.mxu0 0.0
        %1673 = vmatpush2.msra.mxu0 0.0
        %1674 = vmatprep.subr.mxu0 0.0
        %1675 = vmatpush2.msra.mxu0 0.0
        %1676 = vmatprep.subr.mxu0 0.0
        %1677 = vmatpush2.msra.mxu0 0.0
        %1678 = vmatprep.subr.mxu0 0.0
        %1679 = vmatpush2.msra.mxu0 0.0
        %1680 = vmatprep.subr.mxu0 0.0
        %1681 = vmatpush2.msra.mxu0 0.0
        %1682 = vmatprep.subr.mxu0 0.0
        %1683 = vmatpush2.msra.mxu0 0.0
        %1684 = vmatprep.subr.mxu0 0.0
        %1685 = vmatpush2.msra.mxu0 0.0
        %1686 = vmatprep.subr.mxu0 0.0
        %1687 = vmatpush2.msra.mxu0 0.0
        %1688 = vmatprep.subr.mxu0 0.0
        %1689 = vmatpush2.msra.mxu0 0.0
        %1690 = vmatprep.subr.mxu0 0.0
        %1691 = vmatpush2.msra.mxu0 0.0
        %1692 = vmatprep.subr.mxu0 0.0
        %1693 = vmatpush2.msra.mxu0 0.0
        %1694 = vmatprep.subr.mxu0 0.0
        %1695 = vmatpush2.msra.mxu0 0.0
        %1696 = vmatprep.subr.mxu0 0.0
        %1697 = vmatpush2.msra.mxu0 0.0
        %1698 = vmatprep.subr.mxu0 0.0
        %1699 = vmatpush2.msra.mxu0 0.0
        %1700 = vmatprep.mubr.f32.mxu0 0.0
        %1701 = vmatmul.mubr.f32.gmra.mxu0 %v1634
        %v1702 = vpop.f32.mrf.mxu0
        %v1703 = vadd.f32 0.0, %v1702
        %v1704 = vpop.f32.mrf.mxu0
        %1705 = vdwg.mxu0
        %v1706 = vld [vmem:[%s12] sm:$0xff]
        %v1707 = vld [vmem:[%s12 + $0x8] sm:$0xff]
        %v1708 = vld [vmem:[%s12 + $0x10] sm:$0xff]
        %v1709 = vld [vmem:[%s12 + $0x18] sm:$0xff]
        %v1710 = vld [vmem:[%s12 + $0x20] sm:$0xff]
        %v1711 = vld [vmem:[%s12 + $0x28] sm:$0xff]
        %v1712 = vld [vmem:[%s12 + $0x30] sm:$0xff]
        %v1713 = vld [vmem:[%s12 + $0x38] sm:$0xff]
        %v1714 = vld [vmem:[%s12 + $0x40] sm:$0xff]
        %v1715 = vld [vmem:[%s12 + $0x48] sm:$0xff]
        %1716 = vmatprep.subr.mxu0 0.0
        %1717 = vmatpush1.msra.mxu0 0.0
        %1718 = vmatprep.subr.mxu0 0.0
        %1719 = vmatpush1.msra.mxu0 0.0
        %1720 = vmatprep.subr.mxu0 0.0
        %1721 = vmatpush1.msra.mxu0 0.0
        %1722 = vmatprep.subr.mxu0 0.0
        %1723 = vmatpush1.msra.mxu0 0.0
        %1724 = vmatprep.subr.mxu0 0.0
        %1725 = vmatpush1.msra.mxu0 0.0
        %1726 = vmatprep.subr.mxu0 0.0
        %1727 = vmatpush1.msra.mxu0 0.0
        %1728 = vmatprep.subr.mxu0 0.0
        %1729 = vmatpush1.msra.mxu0 %v1715
        %1730 = vmatprep.subr.mxu0 0.0
        %1731 = vmatpush1.msra.mxu0 %v1714
        %1732 = vmatprep.subr.mxu0 0.0
        %1733 = vmatpush1.msra.mxu0 %v1713
        %1734 = vmatprep.subr.mxu0 0.0
        %1735 = vmatpush1.msra.mxu0 %v1712
        %1736 = vmatprep.subr.mxu0 0.0
        %1737 = vmatpush1.msra.mxu0 %v1711
        %1738 = vmatprep.subr.mxu0 0.0
        %1739 = vmatpush1.msra.mxu0 %v1710
        %1740 = vmatprep.subr.mxu0 0.0
        %1741 = vmatpush1.msra.mxu0 %v1709
        %1742 = vmatprep.subr.mxu0 0.0
        %1743 = vmatpush1.msra.mxu0 %v1708
        %1744 = vmatprep.subr.mxu0 0.0
        %1745 = vmatpush1.msra.mxu0 %v1707
        %1746 = vmatprep.subr.mxu0 0.0
        %1747 = vmatpush1.msra.mxu0 %v1706
        %1748 = vmatprep.subr.mxu0 0.0
        %1749 = vmatpush2.msra.mxu0 0.0
        %1750 = vmatprep.subr.mxu0 0.0
        %1751 = vmatpush2.msra.mxu0 0.0
        %1752 = vmatprep.subr.mxu0 0.0
        %1753 = vmatpush2.msra.mxu0 0.0
        %1754 = vmatprep.subr.mxu0 0.0
        %1755 = vmatpush2.msra.mxu0 0.0
        %1756 = vmatprep.subr.mxu0 0.0
        %1757 = vmatpush2.msra.mxu0 0.0
        %1758 = vmatprep.subr.mxu0 0.0
        %1759 = vmatpush2.msra.mxu0 0.0
        %1760 = vmatprep.subr.mxu0 0.0
        %1761 = vmatpush2.msra.mxu0 0.0
        %1762 = vmatprep.subr.mxu0 0.0
        %1763 = vmatpush2.msra.mxu0 0.0
        %1764 = vmatprep.subr.mxu0 0.0
        %1765 = vmatpush2.msra.mxu0 0.0
        %1766 = vmatprep.subr.mxu0 0.0
        %1767 = vmatpush2.msra.mxu0 0.0
        %1768 = vmatprep.subr.mxu0 0.0
        %1769 = vmatpush2.msra.mxu0 0.0
        %1770 = vmatprep.subr.mxu0 0.0
        %1771 = vmatpush2.msra.mxu0 0.0
        %1772 = vmatprep.subr.mxu0 0.0
        %1773 = vmatpush2.msra.mxu0 0.0
        %1774 = vmatprep.subr.mxu0 0.0
        %1775 = vmatpush2.msra.mxu0 0.0
        %1776 = vmatprep.subr.mxu0 0.0
        %1777 = vmatpush2.msra.mxu0 0.0
        %1778 = vmatprep.subr.mxu0 0.0
        %1779 = vmatpush2.msra.mxu0 0.0
        %1780 = vmatprep.mubr.f32.mxu0 0.0
        %1781 = vmatmul.mubr.f32.gmra.mxu0 %v1634
        %v1782 = vpop.f32.mrf.mxu0
        %v1783 = vadd.f32 0.0, %v1782
        %v1784 = vpop.f32.mrf.mxu0
        %1785 = vdwg.mxu0
        %v1786 = vmax.f32 %v1703, %v1783
        %v1787 = vld [vmem:[%s13] sm:$0xff]
        %v1788 = vld [vmem:[%s13 + $0x8] sm:$0xff]
        %v1789 = vld [vmem:[%s13 + $0x10] sm:$0xff]
        %v1790 = vld [vmem:[%s13 + $0x18] sm:$0xff]
        %v1791 = vld [vmem:[%s13 + $0x20] sm:$0xff]
        %v1792 = vld [vmem:[%s13 + $0x28] sm:$0xff]
        %v1793 = vld [vmem:[%s13 + $0x30] sm:$0xff]
        %v1794 = vld [vmem:[%s13 + $0x38] sm:$0xff]
        %v1796 = vrot.slane %v1786, 1
        %vm1797 = vcmask 261120
        %v1798 = vsel %vm1797, %v1796, 0
        %1800 = vmatprep.subr.mxu0 0.0
        %1801 = vmatpush1.msra.mxu0 0.0
        %1802 = vmatprep.subr.mxu0 0.0
        %1803 = vmatpush1.msra.mxu0 0.0
        %1804 = vmatprep.subr.mxu0 0.0
        %1805 = vmatpush1.msra.mxu0 0.0
        %1806 = vmatprep.subr.mxu0 0.0
        %1807 = vmatpush1.msra.mxu0 0.0
        %1808 = vmatprep.subr.mxu0 0.0
        %1809 = vmatpush1.msra.mxu0 0.0
        %1810 = vmatprep.subr.mxu0 0.0
        %1811 = vmatpush1.msra.mxu0 0.0
        %1812 = vmatprep.subr.mxu0 0.0
        %1813 = vmatpush1.msra.mxu0 0.0
        %1814 = vmatprep.subr.mxu0 0.0
        %1815 = vmatpush1.msra.mxu0 0.0
        %1816 = vmatprep.subr.mxu0 0.0
        %1817 = vmatpush1.msra.mxu0 0.0
        %1818 = vmatprep.subr.mxu0 0.0
        %1819 = vmatpush1.msra.mxu0 0.0
        %1820 = vmatprep.subr.mxu0 0.0
        %1821 = vmatpush1.msra.mxu0 0.0
        %1822 = vmatprep.subr.mxu0 0.0
        %1823 = vmatpush1.msra.mxu0 0.0
        %1824 = vmatprep.subr.mxu0 0.0
        %1825 = vmatpush1.msra.mxu0 %v1794
        %1826 = vmatprep.subr.mxu0 0.0
        %1827 = vmatpush1.msra.mxu0 %v1793
        %1828 = vmatprep.subr.mxu0 0.0
        %1829 = vmatpush1.msra.mxu0 %v1792
        %1830 = vmatprep.subr.mxu0 0.0
        %1831 = vmatpush1.msra.mxu0 %v1791
        %1832 = vmatprep.subr.mxu0 0.0
        %1833 = vmatpush2.msra.mxu0 0.0
        %1834 = vmatprep.subr.mxu0 0.0
        %1835 = vmatpush2.msra.mxu0 0.0
        %1836 = vmatprep.subr.mxu0 0.0
        %1837 = vmatpush2.msra.mxu0 0.0
        %1838 = vmatprep.subr.mxu0 0.0
        %1839 = vmatpush2.msra.mxu0 0.0
        %1840 = vmatprep.subr.mxu0 0.0
        %1841 = vmatpush2.msra.mxu0 0.0
        %1842 = vmatprep.subr.mxu0 0.0
        %1843 = vmatpush2.msra.mxu0 0.0
        %1844 = vmatprep.subr.mxu0 0.0
        %1845 = vmatpush2.msra.mxu0 0.0
        %1846 = vmatprep.subr.mxu0 0.0
        %1847 = vmatpush2.msra.mxu0 0.0
        %1848 = vmatprep.subr.mxu0 0.0
        %1849 = vmatpush2.msra.mxu0 0.0
        %1850 = vmatprep.subr.mxu0 0.0
        %1851 = vmatpush2.msra.mxu0 0.0
        %1852 = vmatprep.subr.mxu0 0.0
        %1853 = vmatpush2.msra.mxu0 0.0
        %1854 = vmatprep.subr.mxu0 0.0
        %1855 = vmatpush2.msra.mxu0 0.0
        %1856 = vmatprep.subr.mxu0 0.0
        %1857 = vmatpush2.msra.mxu0 0.0
        %1858 = vmatprep.subr.mxu0 0.0
        %1859 = vmatpush2.msra.mxu0 0.0
        %1860 = vmatprep.subr.mxu0 0.0
        %1861 = vmatpush2.msra.mxu0 0.0
        %1862 = vmatprep.subr.mxu0 0.0
        %1863 = vmatpush2.msra.mxu0 0.0
        %1864 = vmatprep.mubr.f32.mxu0 0.0
        %1865 = vmatmul.mubr.f32.gmra.mxu0 %v1798
        %v1866 = vpop.f32.mrf.mxu0
        %v1867 = vadd.f32 0.0, %v1866
        %v1868 = vpop.f32.mrf.mxu0
        %1869 = vdwg.mxu0
        %v1870 = vsel %vm1797, %v1786, 0
        %1872 = vmatprep.subr.mxu0 0.0
        %1873 = vmatpush1.msra.mxu0 0.0
        %1874 = vmatprep.subr.mxu0 0.0
        %1875 = vmatpush1.msra.mxu0 0.0
        %1876 = vmatprep.subr.mxu0 0.0
        %1877 = vmatpush1.msra.mxu0 0.0
        %1878 = vmatprep.subr.mxu0 0.0
        %1879 = vmatpush1.msra.mxu0 0.0
        %1880 = vmatprep.subr.mxu0 0.0
        %1881 = vmatpush1.msra.mxu0 0.0
        %1882 = vmatprep.subr.mxu0 0.0
        %1883 = vmatpush1.msra.mxu0 0.0
        %1884 = vmatprep.subr.mxu0 0.0
        %1885 = vmatpush1.msra.mxu0 0.0
        %1886 = vmatprep.subr.mxu0 0.0
        %1887 = vmatpush1.msra.mxu0 0.0
        %1888 = vmatprep.subr.mxu0 0.0
        %1889 = vmatpush1.msra.mxu0 0.0
        %1890 = vmatprep.subr.mxu0 0.0
        %1891 = vmatpush1.msra.mxu0 0.0
        %1892 = vmatprep.subr.mxu0 0.0
        %1893 = vmatpush1.msra.mxu0 0.0
        %1894 = vmatprep.subr.mxu0 0.0
        %1895 = vmatpush1.msra.mxu0 0.0
        %1896 = vmatprep.subr.mxu0 0.0
        %1897 = vmatpush1.msra.mxu0 %v1790
        %1898 = vmatprep.subr.mxu0 0.0
        %1899 = vmatpush1.msra.mxu0 %v1789
        %1900 = vmatprep.subr.mxu0 0.0
        %1901 = vmatpush1.msra.mxu0 %v1788
        %1902 = vmatprep.subr.mxu0 0.0
        %1903 = vmatpush1.msra.mxu0 %v1787
        %1904 = vmatprep.subr.mxu0 0.0
        %1905 = vmatpush2.msra.mxu0 0.0
        %1906 = vmatprep.subr.mxu0 0.0
        %1907 = vmatpush2.msra.mxu0 0.0
        %1908 = vmatprep.subr.mxu0 0.0
        %1909 = vmatpush2.msra.mxu0 0.0
        %1910 = vmatprep.subr.mxu0 0.0
        %1911 = vmatpush2.msra.mxu0 0.0
        %1912 = vmatprep.subr.mxu0 0.0
        %1913 = vmatpush2.msra.mxu0 0.0
        %1914 = vmatprep.subr.mxu0 0.0
        %1915 = vmatpush2.msra.mxu0 0.0
        %1916 = vmatprep.subr.mxu0 0.0
        %1917 = vmatpush2.msra.mxu0 0.0
        %1918 = vmatprep.subr.mxu0 0.0
        %1919 = vmatpush2.msra.mxu0 0.0
        %1920 = vmatprep.subr.mxu0 0.0
        %1921 = vmatpush2.msra.mxu0 0.0
        %1922 = vmatprep.subr.mxu0 0.0
        %1923 = vmatpush2.msra.mxu0 0.0
        %1924 = vmatprep.subr.mxu0 0.0
        %1925 = vmatpush2.msra.mxu0 0.0
        %1926 = vmatprep.subr.mxu0 0.0
        %1927 = vmatpush2.msra.mxu0 0.0
        %1928 = vmatprep.subr.mxu0 0.0
        %1929 = vmatpush2.msra.mxu0 0.0
        %1930 = vmatprep.subr.mxu0 0.0
        %1931 = vmatpush2.msra.mxu0 0.0
        %1932 = vmatprep.subr.mxu0 0.0
        %1933 = vmatpush2.msra.mxu0 0.0
        %1934 = vmatprep.subr.mxu0 0.0
        %1935 = vmatpush2.msra.mxu0 0.0
        %1936 = vmatprep.mubr.f32.mxu0 0.0
        %1937 = vmatmul.mubr.f32.gmra.mxu0 %v1870
        %v1938 = vpop.f32.mrf.mxu0
        %v1939 = vadd.f32 %v1867, %v1938
        %v1940 = vpop.f32.mrf.mxu0
        %1941 = vdwg.mxu0
        %v1942 = vld [vmem:[%s14] sm:$0x1]
        %v1943 = vadd.f32 %v1939, %v1942
        %v1944 = vmax.f32 %v1943, 0.0
        %v1945 = vld [vmem:[%s15] sm:$0xff]
        %v1946 = vld [vmem:[%s15 + $0x8] sm:$0xff]
        %v1947 = vld [vmem:[%s15 + $0x10] sm:$0xff]
        %v1948 = vld [vmem:[%s15 + $0x18] sm:$0xff]
        %v1949 = vld [vmem:[%s16] sm:$0x1]
        %v1951 = vsel %vm1797, %v1944, 0
        %1953 = vmatprep.subr.mxu0 0.0
        %1954 = vmatpush1.msra.mxu0 0.0
        %1955 = vmatprep.subr.mxu0 0.0
        %1956 = vmatpush1.msra.mxu0 0.0
        %1957 = vmatprep.subr.mxu0 0.0
        %1958 = vmatpush1.msra.mxu0 0.0
        %1959 = vmatprep.subr.mxu0 0.0
        %1960 = vmatpush1.msra.mxu0 0.0
        %1961 = vmatprep.subr.mxu0 0.0
        %1962 = vmatpush1.msra.mxu0 0.0
        %1963 = vmatprep.subr.mxu0 0.0
        %1964 = vmatpush1.msra.mxu0 0.0
        %1965 = vmatprep.subr.mxu0 0.0
        %1966 = vmatpush1.msra.mxu0 0.0
        %1967 = vmatprep.subr.mxu0 0.0
        %1968 = vmatpush1.msra.mxu0 0.0
        %1969 = vmatprep.subr.mxu0 0.0
        %1970 = vmatpush1.msra.mxu0 0.0
        %1971 = vmatprep.subr.mxu0 0.0
        %1972 = vmatpush1.msra.mxu0 0.0
        %1973 = vmatprep.subr.mxu0 0.0
        %1974 = vmatpush1.msra.mxu0 0.0
        %1975 = vmatprep.subr.mxu0 0.0
        %1976 = vmatpush1.msra.mxu0 0.0
        %1977 = vmatprep.subr.mxu0 0.0
        %1978 = vmatpush1.msra.mxu0 %v1948
        %1979 = vmatprep.subr.mxu0 0.0
        %1980 = vmatpush1.msra.mxu0 %v1947
        %1981 = vmatprep.subr.mxu0 0.0
        %1982 = vmatpush1.msra.mxu0 %v1946
        %1983 = vmatprep.subr.mxu0 0.0
        %1984 = vmatpush1.msra.mxu0 %v1945
        %1985 = vmatprep.subr.mxu0 0.0
        %1986 = vmatpush2.msra.mxu0 0.0
        %1987 = vmatprep.subr.mxu0 0.0
        %1988 = vmatpush2.msra.mxu0 0.0
        %1989 = vmatprep.subr.mxu0 0.0
        %1990 = vmatpush2.msra.mxu0 0.0
        %1991 = vmatprep.subr.mxu0 0.0
        %1992 = vmatpush2.msra.mxu0 0.0
        %1993 = vmatprep.subr.mxu0 0.0
        %1994 = vmatpush2.msra.mxu0 0.0
        %1995 = vmatprep.subr.mxu0 0.0
        %1996 = vmatpush2.msra.mxu0 0.0
        %1997 = vmatprep.subr.mxu0 0.0
        %1998 = vmatpush2.msra.mxu0 0.0
        %1999 = vmatprep.subr.mxu0 0.0
        %2000 = vmatpush2.msra.mxu0 0.0
        %2001 = vmatprep.subr.mxu0 0.0
        %2002 = vmatpush2.msra.mxu0 0.0
        %2003 = vmatprep.subr.mxu0 0.0
        %2004 = vmatpush2.msra.mxu0 0.0
        %2005 = vmatprep.subr.mxu0 0.0
        %2006 = vmatpush2.msra.mxu0 0.0
        %2007 = vmatprep.subr.mxu0 0.0
        %2008 = vmatpush2.msra.mxu0 0.0
        %2009 = vmatprep.subr.mxu0 0.0
        %2010 = vmatpush2.msra.mxu0 0.0
        %2011 = vmatprep.subr.mxu0 0.0
        %2012 = vmatpush2.msra.mxu0 0.0
        %2013 = vmatprep.subr.mxu0 0.0
        %2014 = vmatpush2.msra.mxu0 0.0
        %2015 = vmatprep.subr.mxu0 0.0
        %2016 = vmatpush2.msra.mxu0 0.0
        %2017 = vmatprep.mubr.f32.mxu0 0.0
        %2018 = vmatmul.mubr.f32.gmra.mxu0 %v1951
        %v2019 = vpop.f32.mrf.mxu0
        %v2020 = vadd.f32 %v1949, %v2019
        %v2021 = vpop.f32.mrf.mxu0
        %2022 = vdwg.mxu0
        %v2023 = vmax.f32 %v2020, 0.0
        %v2024 = vld [vmem:[%s17] sm:$0xff]
        %v2025 = vld [vmem:[%s17 + $0x8] sm:$0xff]
        %v2026 = vld [vmem:[%s17 + $0x10] sm:$0xff]
        %v2027 = vld [vmem:[%s17 + $0x18] sm:$0xff]
        %v2028 = vld [vmem:[%s18] sm:$0x1]
        %v2030 = vsel %vm1797, %v2023, 0
        %2032 = vmatprep.subr.mxu0 0.0
        %2033 = vmatpush1.msra.mxu0 0.0
        %2034 = vmatprep.subr.mxu0 0.0
        %2035 = vmatpush1.msra.mxu0 0.0
        %2036 = vmatprep.subr.mxu0 0.0
        %2037 = vmatpush1.msra.mxu0 0.0
        %2038 = vmatprep.subr.mxu0 0.0
        %2039 = vmatpush1.msra.mxu0 0.0
        %2040 = vmatprep.subr.mxu0 0.0
        %2041 = vmatpush1.msra.mxu0 0.0
        %2042 = vmatprep.subr.mxu0 0.0
        %2043 = vmatpush1.msra.mxu0 0.0
        %2044 = vmatprep.subr.mxu0 0.0
        %2045 = vmatpush1.msra.mxu0 0.0
        %2046 = vmatprep.subr.mxu0 0.0
        %2047 = vmatpush1.msra.mxu0 0.0
        %2048 = vmatprep.subr.mxu0 0.0
        %2049 = vmatpush1.msra.mxu0 0.0
        %2050 = vmatprep.subr.mxu0 0.0
        %2051 = vmatpush1.msra.mxu0 0.0
        %2052 = vmatprep.subr.mxu0 0.0
        %2053 = vmatpush1.msra.mxu0 0.0
        %2054 = vmatprep.subr.mxu0 0.0
        %2055 = vmatpush1.msra.mxu0 0.0
        %2056 = vmatprep.subr.mxu0 0.0
        %2057 = vmatpush1.msra.mxu0 %v2027
        %2058 = vmatprep.subr.mxu0 0.0
        %2059 = vmatpush1.msra.mxu0 %v2026
        %2060 = vmatprep.subr.mxu0 0.0
        %2061 = vmatpush1.msra.mxu0 %v2025
        %2062 = vmatprep.subr.mxu0 0.0
        %2063 = vmatpush1.msra.mxu0 %v2024
        %2064 = vmatprep.subr.mxu0 0.0
        %2065 = vmatpush2.msra.mxu0 0.0
        %2066 = vmatprep.subr.mxu0 0.0
        %2067 = vmatpush2.msra.mxu0 0.0
        %2068 = vmatprep.subr.mxu0 0.0
        %2069 = vmatpush2.msra.mxu0 0.0
        %2070 = vmatprep.subr.mxu0 0.0
        %2071 = vmatpush2.msra.mxu0 0.0
        %2072 = vmatprep.subr.mxu0 0.0
        %2073 = vmatpush2.msra.mxu0 0.0
        %2074 = vmatprep.subr.mxu0 0.0
        %2075 = vmatpush2.msra.mxu0 0.0
        %2076 = vmatprep.subr.mxu0 0.0
        %2077 = vmatpush2.msra.mxu0 0.0
        %2078 = vmatprep.subr.mxu0 0.0
        %2079 = vmatpush2.msra.mxu0 0.0
        %2080 = vmatprep.subr.mxu0 0.0
        %2081 = vmatpush2.msra.mxu0 0.0
        %2082 = vmatprep.subr.mxu0 0.0
        %2083 = vmatpush2.msra.mxu0 0.0
        %2084 = vmatprep.subr.mxu0 0.0
        %2085 = vmatpush2.msra.mxu0 0.0
        %2086 = vmatprep.subr.mxu0 0.0
        %2087 = vmatpush2.msra.mxu0 0.0
        %2088 = vmatprep.subr.mxu0 0.0
        %2089 = vmatpush2.msra.mxu0 0.0
        %2090 = vmatprep.subr.mxu0 0.0
        %2091 = vmatpush2.msra.mxu0 0.0
        %2092 = vmatprep.subr.mxu0 0.0
        %2093 = vmatpush2.msra.mxu0 0.0
        %2094 = vmatprep.subr.mxu0 0.0
        %2095 = vmatpush2.msra.mxu0 0.0
        %2096 = vmatprep.mubr.f32.mxu0 0.0
        %2097 = vmatmul.mubr.f32.gmra.mxu0 %v2030
        %v2098 = vpop.f32.mrf.mxu0
        %v2099 = vadd.f32 %v2028, %v2098
        %v2100 = vpop.f32.mrf.mxu0
        %2101 = vdwg.mxu0
        %vm2102 = vcmask 16384
        %2103 = vst.msk [vmem:[%s594] sm:$0x1] %vm2102, %v2099
        %s2104 = sand.u32 %s445, 1
        %s2105 = scalar_lea.sflag [#allocation3], %s2104
        %s2106 = sand.u32 %s445, 1
        %s2107 = scalar_lea.vmem [#allocation2], %s2106
        // Predicated region
        $region97: #{tpu_custom_call.1} parent=95 // pred_check
          %p2108 = pneg %p455
        $region98: #{tpu_custom_call.1} parent=95 // pred_check_branch
          %2110 = sbr.rel (%p2108) target = $region100
        $region99: #{tpu_custom_call.1} parent=95 // pred_region
          %s2112 = ssub.s32 16, 16
          %2113 = vsyncadd %s2105, %s2112
          %s2114 = smul.addr %s33, 16
          %s2115 = scalar_lea.hbm %s19, %s2114
          %s2117 = sshll.u32 %s2107, 4
          %s2118 = int_to_ptr.vmem [resolvable:$true] %s2117
          %2120 = dma.vmem_to_hbm [thread:$0]  %s2118, 16, %s2115, %s2105
        $region100: #{tpu_custom_call.1} parent=95 // pred_fallthru
          _
      $region96: #{tpu_custom_call.1} parent=5 // pred_fallthru
        _
      %p2121 = scmp.le.s32.totalorder 2, %s28
      // Predicated region
      $region101: #{tpu_custom_call.1} parent=5 // pred_check
        %p2122 = pneg %p2121
      $region102: #{tpu_custom_call.1} parent=5 // pred_check_branch
        %2124 = sbr.rel (%p2122) target = $region104
      $region103: #{tpu_custom_call.1} parent=5 // pred_region
        %s2125 = ssub.s32 %s28, 2
        // Predicated region
        $region105: #{tpu_custom_call.1} parent=103 // pred_check
          %p2126 = pneg %p461
        $region106: #{tpu_custom_call.1} parent=103 // pred_check_branch
          %2128 = sbr.rel (%p2126) target = $region108
        $region107: #{tpu_custom_call.1} parent=103 // pred_region
          %s2129 = sand.u32 %s446, 1
          %s2130 = scalar_lea.sflag [#allocation3], %s2129
          %s2131 = sand.u32 %s446, 1
          %s2132 = scalar_lea.vmem [#allocation2], %s2131
          %2133 = dma.done %s2130, 16
        $region108: #{tpu_custom_call.1} parent=103 // pred_fallthru
          _
      $region104: #{tpu_custom_call.1} parent=5 // pred_fallthru
        _
    $region6: #{tpu_custom_call.1} parent=1 // loop_footer
      %s32 = sadd.s32 1, %s28
    $region7: #{tpu_custom_call.1} parent=1 // loop_footer_branch
      %27 = sbr.rel target = $region3
    $region8: #{tpu_custom_call.1} parent=1 // loop_exit
      _
    %2134 = vsyncpa [#allocation3], 1
    %s2135 = scalar_lea.sflag [#allocation3], 1
    %2136 = vsyncpa %s2135, 1

</llo_original>
